<compile_context>
chip_gen: v7x
topology: tpu7x:2x2x1
jax: 0.10.0
libtpu: 0.0.40
codegen_flags: <defaults>
</compile_context>

<pallas_src>
import jax
import jax.numpy as jnp
import numpy as np
from jax import lax
from jax.experimental import pallas as pl
from jax.experimental.pallas import tpu as pltpu


# ----------------------------- parameters -----------------------------------

def build_params(key, n_layers, seq_len, d, w_scale=0.05):
    """Deterministic synthetic weights matching the PyTorch module's shapes."""
    ks = jax.random.split(key, 10)

    def nrm(k, shape, s):
        return jax.random.normal(k, shape, dtype=jnp.float32) * s

    return dict(
        pos=nrm(ks[0], (seq_len, d), 0.02),                 # nn.Embedding(seq_len, D).weight
        ln_g=jnp.ones((n_layers, d), jnp.float32),          # per-layer LayerNorm gamma
        ln_b=jnp.zeros((n_layers, d), jnp.float32),         # per-layer LayerNorm beta
        wq=nrm(ks[1], (n_layers, d, d), w_scale),            # in_proj (q part), bias=False
        wk=nrm(ks[2], (n_layers, d, d), w_scale),
        wv=nrm(ks[3], (n_layers, d, d), w_scale),
        wo=nrm(ks[4], (n_layers, d, d), w_scale),            # out_proj, bias=False
        w1=nrm(ks[5], (n_layers, d, d), w_scale),            # conv1 weight[:, :, 0]
        b1=nrm(ks[6], (n_layers, d), 0.01),                  # conv1 bias
        w2=nrm(ks[7], (n_layers, d, d), w_scale),            # conv2 weight[:, :, 0]
        b2=nrm(ks[8], (n_layers, d), 0.01),                  # conv2 bias
        fg=jnp.ones((d,), jnp.float32),                      # output_norm gamma
        fb=jnp.zeros((d,), jnp.float32),                     # output_norm beta
    )


# ------------------------------- kernel --------------------------------------

def make_encoder_kernel(n_layers, n_heads, seq_len, d, no_scale, use_pos):
    S, D, H = seq_len, d, n_heads
    d_head = D // H
    emb_scale = 1.0 if no_scale else float(D) ** 0.5
    eps = 1e-5

    def layer_norm(v, g, b):           # f32 elementwise path
        mu = jnp.mean(v, axis=-1, keepdims=True)
        var = jnp.mean(jnp.square(v - mu), axis=-1, keepdims=True)
        return (v - mu) * lax.rsqrt(var + eps) * g + b

    def matmul_t(x2d, w_bf16):
        # (S, Din) @ (Dout, Din)^T ; bf16 MXU inputs, f32 accumulation.
        return lax.dot_general(x2d.astype(jnp.bfloat16), w_bf16,
                               (((1,), (1,)), ((), ())),
                               preferred_element_type=jnp.float32)

    def split_heads(t2d):
        # (S, D) f32 -> (H, S, d_head) bf16.  Leading-axis stack of lane
        # slices (cheap major-dim concat), feeding ONE batched einsum.
        return jnp.stack(
            [t2d[:, h * d_head:(h + 1) * d_head] for h in range(H)], axis=0
        ).astype(jnp.bfloat16)

    def kernel(x_ref, pos_ref, lng_ref, lnb_ref, wq_ref, wkv_ref, wo_ref,
               w1_ref, b1_ref, w2_ref, b2_ref, fg_ref, fb_ref,
               o_ref, x_acc):
        lidx = pl.program_id(1)        # layer index (grid axis 1, "arbitrary")

        # Initialize the resident activation at the first layer.
        @pl.when(lidx == 0)
        def _init():
            xi = x_ref[0] * emb_scale
            if use_pos:
                xi = xi + pos_ref[...]
            x_acc[...] = xi

        x = x_acc[...]                 # (S, D) f32 running activation

        # Additive float tril mask generated in-kernel (iota + compare).
        row = lax.broadcasted_iota(jnp.int32, (S, S), 0)
        col = lax.broadcasted_iota(jnp.int32, (S, S), 1)
        add_bias = jnp.where(row >= col, 1.0, 0.0)            # (S, S) f32

        # ---- multi-head self-attention (query pre-LayerNormed, k/v raw) ----
        q_in = layer_norm(x, lng_ref[0, 0], lnb_ref[0, 0])
        q = matmul_t(q_in, wq_ref[0])                         # (S, D); 1/sqrt(dh) folded into Wq
        kv = matmul_t(x, wkv_ref[0])                          # (S, 2D); fused K|V projection
        qh = split_heads(q)                                   # (H, S, dh) bf16
        kh = split_heads(kv[:, :D])
        vh = split_heads(kv[:, D:])

        s = jnp.einsum('hqd,hkd->hqk', qh, kh,
                       preferred_element_type=jnp.float32)    # (H, S, S) f32
        s = s + add_bias[None, :, :]                          # additive float mask
        m = jnp.max(s, axis=-1, keepdims=True)
        p = jnp.exp(s - m)
        denom = jnp.sum(p, axis=-1, keepdims=True)            # (H, S, 1)
        ctx = jnp.einsum('hqk,hkd->hqd', p.astype(jnp.bfloat16), vh,
                         preferred_element_type=jnp.float32)  # (H, S, dh)
        # Deferred softmax normalization on the (small) context, EUP reciprocal.
        ctx = ctx * pl.reciprocal(denom, approx=True)
        attn = jnp.concatenate([ctx[h] for h in range(H)], axis=-1)   # (S, D)
        x = x + matmul_t(attn, wo_ref[0])                     # residual

        # ---- PointWiseFeedForward: two 1x1 Conv1d == channel-mixing linears ----
        h1 = jnp.maximum(matmul_t(x, w1_ref[0]) + b1_ref[0], 0.0)
        x = x + matmul_t(h1, w2_ref[0]) + b2_ref[0]           # residual

        x_acc[...] = x                                        # carry to next layer

        @pl.when(lidx == n_layers - 1)
        def _final():
            o_ref[0] = layer_norm(x, fg_ref[0], fb_ref[0]).astype(o_ref.dtype)

    return kernel


def transformer_encoder_pallas(x, params, *, n_layers, n_heads,
                               no_scale=False, use_positional_embedding=True):
    B, S, D = x.shape
    L = n_layers
    dh = D // n_heads

    # Trace-time weight prep: fold 1/sqrt(d_head) into Wq, fuse K|V weights,
    # cast all matmul weights to bf16 (halves weight DMA; f32 accumulation).
    wq = (params['wq'] * (1.0 / float(dh) ** 0.5)).astype(jnp.bfloat16)
    wkv = jnp.concatenate([params['wk'], params['wv']], axis=1).astype(jnp.bfloat16)
    wo = params['wo'].astype(jnp.bfloat16)
    w1 = params['w1'].astype(jnp.bfloat16)
    w2 = params['w2'].astype(jnp.bfloat16)
    lng = params['ln_g'].reshape(L, 1, D)
    lnb = params['ln_b'].reshape(L, 1, D)
    b1 = params['b1'].reshape(L, 1, D)
    b2 = params['b2'].reshape(L, 1, D)
    fg = params['fg'].reshape(1, D)
    fb = params['fb'].reshape(1, D)
    pos = params['pos']

    kernel = make_encoder_kernel(L, n_heads, S, D, no_scale,
                                 use_positional_embedding)

    per_batch = lambda b, l: (b, 0, 0)
    per_layer = lambda b, l: (l, 0, 0)
    whole2d = lambda b, l: (0, 0)

    grid_spec = pltpu.PrefetchScalarGridSpec(
        num_scalar_prefetch=0,
        grid=(B, L),                           # batch (parallel), layer (carry)
        in_specs=[
            pl.BlockSpec((1, S, D), per_batch),        # x
            pl.BlockSpec((S, D), whole2d),             # positional embedding
            pl.BlockSpec((1, 1, D), per_layer),        # LayerNorm gamma
            pl.BlockSpec((1, 1, D), per_layer),        # LayerNorm beta
            pl.BlockSpec((1, D, D), per_layer),        # Wq (pre-scaled, bf16)
            pl.BlockSpec((1, 2 * D, D), per_layer),    # fused Wk|Wv (bf16)
            pl.BlockSpec((1, D, D), per_layer),        # Wo (bf16)
            pl.BlockSpec((1, D, D), per_layer),        # W1 (bf16)
            pl.BlockSpec((1, 1, D), per_layer),        # b1
            pl.BlockSpec((1, D, D), per_layer),        # W2 (bf16)
            pl.BlockSpec((1, 1, D), per_layer),        # b2
            pl.BlockSpec((1, D), whole2d),             # output_norm gamma
            pl.BlockSpec((1, D), whole2d),             # output_norm beta
        ],
        out_specs=pl.BlockSpec((1, S, D), per_batch),  # same block across layer axis
        scratch_shapes=[pltpu.VMEM((S, D), jnp.float32)],   # resident activation carry
    )

    flops = int(B) * L * (12 * S * D * D + 4 * S * S * D)
    transcendentals = int(B) * L * (n_heads * S * S + n_heads * S + 3 * S)
    weight_bytes = sum(int(a.size) * a.dtype.itemsize
                       for a in (pos, lng, lnb, wq, wkv, wo, w1, b1, w2, b2, fg, fb))
    bytes_accessed = 2 * int(x.size) * 4 + int(B) * weight_bytes

    return pl.pallas_call(
        kernel,
        grid_spec=grid_spec,
        out_shape=jax.ShapeDtypeStruct((B, S, D), jnp.float32),
        compiler_params=pltpu.CompilerParams(
            dimension_semantics=("parallel", "arbitrary")),
        cost_estimate=pl.CostEstimate(flops=flops,
                                      transcendentals=transcendentals,
                                      bytes_accessed=bytes_accessed),
    )(x, pos, lng, lnb, wq, wkv, wo, w1, b1, w2, b2, fg, fb)


# ------------------------- pure-JAX reference --------------------------------

def transformer_encoder_ref(x, p, *, n_layers, n_heads,
                            no_scale=False, use_positional_embedding=True):
    B, S, D = x.shape
    dh = D // n_heads

    def ln(v, g, b):
        mu = v.mean(-1, keepdims=True)
        var = ((v - mu) ** 2).mean(-1, keepdims=True)
        return (v - mu) / jnp.sqrt(var + 1e-5) * g + b

    if not no_scale:
        x = x * (D ** 0.5)
    if use_positional_embedding:
        x = x + p['pos'][None]
    add_bias = jnp.tril(jnp.ones((S, S), jnp.float32))[None, None]   # additive float mask

    for l in range(n_layers):
        qi = ln(x, p['ln_g'][l], p['ln_b'][l])
        q = (qi @ p['wq'][l].T).reshape(B, S, n_heads, dh)
        k = (x @ p['wk'][l].T).reshape(B, S, n_heads, dh)
        v = (x @ p['wv'][l].T).reshape(B, S, n_heads, dh)
        s = jnp.einsum('bqhd,bkhd->bhqk', q / (dh ** 0.5), k) + add_bias
        pw = jax.nn.softmax(s, axis=-1)
        a = jnp.einsum('bhqk,bkhd->bqhd', pw, v).reshape(B, S, D)
        x = x + a @ p['wo'][l].T
        h = jnp.maximum(x @ p['w1'][l].T + p['b1'][l], 0.0)
        x = x + (h @ p['w2'][l].T + p['b2'][l])
    return ln(x, p['fg'], p['fb'])


# --------------------------------- main ---------------------------------------

if __name__ == "__main__":
    B, S, D, H, L = 2, 8, 32, 4, 2   # batch, seq_len, n_output_dims, n_heads, n_layers

    key = jax.random.PRNGKey(0)
    kx, kp = jax.random.split(key)
    x = jax.random.normal(kx, (B, S, D), dtype=jnp.float32) * 0.5
    params = build_params(kp, L, S, D)

    out = transformer_encoder_pallas(x, params, n_layers=L, n_heads=H)
    out = jax.block_until_ready(out)

    ref = transformer_encoder_ref(x, params, n_layers=L, n_heads=H)
    assert out.shape == (B, S, D)
    np.testing.assert_allclose(np.asarray(out), np.asarray(ref),
                               atol=5e-2, rtol=5e-2)
    print("KERNEL_OK")
</pallas_src>

<mosaic_0001>
module attributes {stable_mosaic.version = 11 : i64} {
  func.func @kernel(%arg0: i32, %arg1: i32, %arg2: memref<1x8x32xf32, #tpu.memory_space<vmem>>, %arg3: memref<8x32xf32, #tpu.memory_space<vmem>>, %arg4: memref<1x1x32xf32, #tpu.memory_space<vmem>>, %arg5: memref<1x1x32xf32, #tpu.memory_space<vmem>>, %arg6: memref<1x32x32xbf16, #tpu.memory_space<vmem>>, %arg7: memref<1x64x32xbf16, #tpu.memory_space<vmem>>, %arg8: memref<1x32x32xbf16, #tpu.memory_space<vmem>>, %arg9: memref<1x32x32xbf16, #tpu.memory_space<vmem>>, %arg10: memref<1x1x32xf32, #tpu.memory_space<vmem>>, %arg11: memref<1x32x32xbf16, #tpu.memory_space<vmem>>, %arg12: memref<1x1x32xf32, #tpu.memory_space<vmem>>, %arg13: memref<1x32xf32, #tpu.memory_space<vmem>>, %arg14: memref<1x32xf32, #tpu.memory_space<vmem>>, %arg15: memref<1x8x32xf32, #tpu.memory_space<vmem>>, %arg16: memref<8x32xf32, #tpu.memory_space<vmem>>) attributes {dimension_semantics = [#tpu.dimension_semantics<parallel>, #tpu.dimension_semantics<arbitrary>], iteration_bounds = array<i64: 2, 2>, scalar_prefetch = 0 : i64, scratch_operands = 1 : i64, tpu.core_type = #tpu.core_type<tc>, window_params = [{transform_indices = @transform_0, window_bounds = array<i64: 1, 8, 32>}, {pipeline_mode = #tpu.pipeline_mode<synchronous>, transform_indices = @transform_1, window_bounds = array<i64: 8, 32>}, {transform_indices = @transform_2, window_bounds = array<i64: 1, 1, 32>}, {transform_indices = @transform_3, window_bounds = array<i64: 1, 1, 32>}, {transform_indices = @transform_4, window_bounds = array<i64: 1, 32, 32>}, {transform_indices = @transform_5, window_bounds = array<i64: 1, 64, 32>}, {transform_indices = @transform_6, window_bounds = array<i64: 1, 32, 32>}, {transform_indices = @transform_7, window_bounds = array<i64: 1, 32, 32>}, {transform_indices = @transform_8, window_bounds = array<i64: 1, 1, 32>}, {transform_indices = @transform_9, window_bounds = array<i64: 1, 32, 32>}, {transform_indices = @transform_10, window_bounds = array<i64: 1, 1, 32>}, {pipeline_mode = #tpu.pipeline_mode<synchronous>, transform_indices = @transform_11, window_bounds = array<i64: 1, 32>}, {pipeline_mode = #tpu.pipeline_mode<synchronous>, transform_indices = @transform_12, window_bounds = array<i64: 1, 32>}, {transform_indices = @transform_13, window_bounds = array<i64: 1, 8, 32>}]} {
    %c0_i32 = arith.constant 0 : i32
    %0 = arith.cmpi eq, %arg1, %c0_i32 : i32
    %1 = arith.extui %0 : i1 to i32
    %c0_i32_0 = arith.constant 0 : i32
    %2 = arith.cmpi ne, %1, %c0_i32_0 : i32
    scf.if %2 {
      %c0_48 = arith.constant 0 : index
      %c0_49 = arith.constant 0 : index
      %c0_50 = arith.constant 0 : index
      %131 = vector.load %arg2[%c0_48, %c0_49, %c0_50] : memref<1x8x32xf32, #tpu.memory_space<vmem>>, vector<1x8x32xf32>
      %132 = vector.shape_cast %131 : vector<1x8x32xf32> to vector<8x32xf32>
      %cst_51 = arith.constant 5.65685415 : f32
      %133 = vector.broadcast %cst_51 : f32 to vector<8x32xf32>
      %134 = arith.mulf %132, %133 : vector<8x32xf32>
      %c0_52 = arith.constant 0 : index
      %c0_53 = arith.constant 0 : index
      %135 = vector.load %arg3[%c0_52, %c0_53] : memref<8x32xf32, #tpu.memory_space<vmem>>, vector<8x32xf32>
      %136 = arith.addf %134, %135 : vector<8x32xf32>
      %c0_54 = arith.constant 0 : index
      %c0_55 = arith.constant 0 : index
      %137 = vector.load %arg16[%c0_54, %c0_55] : memref<8x32xf32, #tpu.memory_space<vmem>>, vector<8x32xf32>
      tpu.vector_store %arg16[%c0_54, %c0_55], %136 {strides = array<i32>} : memref<8x32xf32, #tpu.memory_space<vmem>>, vector<8x32xf32>,
    } else {
    }
    %c0 = arith.constant 0 : index
    %c0_1 = arith.constant 0 : index
    %3 = vector.load %arg16[%c0, %c0_1] : memref<8x32xf32, #tpu.memory_space<vmem>>, vector<8x32xf32>
    %4 = tpu.iota {dimensions = array<i32: 0>} : vector<8x8xi32>
    %5 = tpu.iota {dimensions = array<i32: 1>} : vector<8x8xi32>
    %6 = arith.cmpi sge, %4, %5 : vector<8x8xi32>
    %cst = arith.constant 1.000000e+00 : f32
    %cst_2 = arith.constant 0.000000e+00 : f32
    %7 = vector.broadcast %cst : f32 to vector<8x8xf32>
    %8 = vector.broadcast %cst_2 : f32 to vector<8x8xf32>
    %9 = arith.select %6, %7, %8 : vector<8x8xi1>, vector<8x8xf32>
    %c0_3 = arith.constant 0 : index
    %c0_4 = arith.constant 0 : index
    %c0_5 = arith.constant 0 : index
    %10 = vector.load %arg4[%c0_3, %c0_4, %c0_5] : memref<1x1x32xf32, #tpu.memory_space<vmem>>, vector<1x1x32xf32>
    %11 = vector.shape_cast %10 : vector<1x1x32xf32> to vector<32xf32>
    %c0_6 = arith.constant 0 : index
    %c0_7 = arith.constant 0 : index
    %c0_8 = arith.constant 0 : index
    %12 = vector.load %arg5[%c0_6, %c0_7, %c0_8] : memref<1x1x32xf32, #tpu.memory_space<vmem>>, vector<1x1x32xf32>
    %13 = vector.shape_cast %12 : vector<1x1x32xf32> to vector<32xf32>
    %cst_9 = arith.constant dense<0.000000e+00> : vector<8xf32>
    %14 = vector.multi_reduction <add>, %3, %cst_9 [1] : vector<8x32xf32> to vector<8xf32>
    %15 = vector.shape_cast %14 : vector<8xf32> to vector<8x1xf32>
    %cst_10 = arith.constant 3.200000e+01 : f32
    %16 = vector.broadcast %cst_10 : f32 to vector<8x1xf32>
    %17 = arith.divf %15, %16 : vector<8x1xf32>
    %18 = vector.broadcast %17 : vector<8x1xf32> to vector<8x32xf32>
    %19 = arith.subf %3, %18 : vector<8x32xf32>
    %20 = arith.mulf %19, %19 : vector<8x32xf32>
    %cst_11 = arith.constant dense<0.000000e+00> : vector<8xf32>
    %21 = vector.multi_reduction <add>, %20, %cst_11 [1] : vector<8x32xf32> to vector<8xf32>
    %22 = vector.shape_cast %21 : vector<8xf32> to vector<8x1xf32>
    %cst_12 = arith.constant 3.200000e+01 : f32
    %23 = vector.broadcast %cst_12 : f32 to vector<8x1xf32>
    %24 = arith.divf %22, %23 : vector<8x1xf32>
    %25 = vector.broadcast %17 : vector<8x1xf32> to vector<8x32xf32>
    %26 = arith.subf %3, %25 : vector<8x32xf32>
    %cst_13 = arith.constant 9.99999974E-6 : f32
    %27 = vector.broadcast %cst_13 : f32 to vector<8x1xf32>
    %28 = arith.addf %24, %27 : vector<8x1xf32>
    %29 = math.rsqrt %28 : vector<8x1xf32>
    %30 = vector.broadcast %29 : vector<8x1xf32> to vector<8x32xf32>
    %31 = arith.mulf %26, %30 : vector<8x32xf32>
    %32 = vector.shape_cast %11 : vector<32xf32> to vector<1x32xf32>
    %33 = vector.broadcast %32 : vector<1x32xf32> to vector<8x32xf32>
    %34 = arith.mulf %31, %33 : vector<8x32xf32>
    %35 = vector.shape_cast %13 : vector<32xf32> to vector<1x32xf32>
    %36 = vector.broadcast %35 : vector<1x32xf32> to vector<8x32xf32>
    %37 = arith.addf %34, %36 : vector<8x32xf32>
    %c0_14 = arith.constant 0 : index
    %c0_15 = arith.constant 0 : index
    %c0_16 = arith.constant 0 : index
    %38 = vector.load %arg6[%c0_14, %c0_15, %c0_16] : memref<1x32x32xbf16, #tpu.memory_space<vmem>>, vector<1x32x32xbf16>
    %39 = vector.shape_cast %38 : vector<1x32x32xbf16> to vector<32x32xbf16>
    %40 = arith.truncf %37 : vector<8x32xf32> to vector<8x32xbf16>
    %cst_17 = arith.constant dense<0.000000e+00> : vector<8x32xf32>
    %41 = tpu.matmul %40, %39, %cst_17 {dimension_numbers = #tpu.dot_dimension_numbers<[1], [1], [0], [0], [0, 0, 1, 0], [], []>} : vector<8x32xbf16>, vector<32x32xbf16>, vector<8x32xf32> -> vector<8x32xf32>
    %c0_18 = arith.constant 0 : index
    %c0_19 = arith.constant 0 : index
    %c0_20 = arith.constant 0 : index
    %42 = vector.load %arg7[%c0_18, %c0_19, %c0_20] : memref<1x64x32xbf16, #tpu.memory_space<vmem>>, vector<1x64x32xbf16>
    %43 = vector.shape_cast %42 : vector<1x64x32xbf16> to vector<64x32xbf16>
    %44 = arith.truncf %3 : vector<8x32xf32> to vector<8x32xbf16>
    %cst_21 = arith.constant dense<0.000000e+00> : vector<8x64xf32>
    %45 = tpu.matmul %44, %43, %cst_21 {dimension_numbers = #tpu.dot_dimension_numbers<[1], [1], [0], [0], [0, 0, 1, 0], [], []>} : vector<8x32xbf16>, vector<64x32xbf16>, vector<8x64xf32> -> vector<8x64xf32>
    %46 = vector.extract_strided_slice %41 {offsets = [0, 0], sizes = [8, 8], strides = [1, 1]} : vector<8x32xf32> to vector<8x8xf32>
    %47 = vector.extract_strided_slice %41 {offsets = [0, 8], sizes = [8, 8], strides = [1, 1]} : vector<8x32xf32> to vector<8x8xf32>
    %48 = vector.extract_strided_slice %41 {offsets = [0, 16], sizes = [8, 8], strides = [1, 1]} : vector<8x32xf32> to vector<8x8xf32>
    %49 = vector.extract_strided_slice %41 {offsets = [0, 24], sizes = [8, 8], strides = [1, 1]} : vector<8x32xf32> to vector<8x8xf32>
    %50 = vector.shape_cast %46 : vector<8x8xf32> to vector<1x8x8xf32>
    %51 = vector.shape_cast %47 : vector<8x8xf32> to vector<1x8x8xf32>
    %52 = vector.shape_cast %48 : vector<8x8xf32> to vector<1x8x8xf32>
    %53 = vector.shape_cast %49 : vector<8x8xf32> to vector<1x8x8xf32>
    %54 = tpu.concatenate %50, %51, %52, %53 in 0 : vector<1x8x8xf32>, vector<1x8x8xf32>, vector<1x8x8xf32>, vector<1x8x8xf32> -> vector<4x8x8xf32>
    %55 = arith.truncf %54 : vector<4x8x8xf32> to vector<4x8x8xbf16>
    %56 = vector.extract_strided_slice %45 {offsets = [0, 0], sizes = [8, 32], strides = [1, 1]} : vector<8x64xf32> to vector<8x32xf32>
    %57 = vector.extract_strided_slice %56 {offsets = [0, 0], sizes = [8, 8], strides = [1, 1]} : vector<8x32xf32> to vector<8x8xf32>
    %58 = vector.extract_strided_slice %56 {offsets = [0, 8], sizes = [8, 8], strides = [1, 1]} : vector<8x32xf32> to vector<8x8xf32>
    %59 = vector.extract_strided_slice %56 {offsets = [0, 16], sizes = [8, 8], strides = [1, 1]} : vector<8x32xf32> to vector<8x8xf32>
    %60 = vector.extract_strided_slice %56 {offsets = [0, 24], sizes = [8, 8], strides = [1, 1]} : vector<8x32xf32> to vector<8x8xf32>
    %61 = vector.shape_cast %57 : vector<8x8xf32> to vector<1x8x8xf32>
    %62 = vector.shape_cast %58 : vector<8x8xf32> to vector<1x8x8xf32>
    %63 = vector.shape_cast %59 : vector<8x8xf32> to vector<1x8x8xf32>
    %64 = vector.shape_cast %60 : vector<8x8xf32> to vector<1x8x8xf32>
    %65 = tpu.concatenate %61, %62, %63, %64 in 0 : vector<1x8x8xf32>, vector<1x8x8xf32>, vector<1x8x8xf32>, vector<1x8x8xf32> -> vector<4x8x8xf32>
    %66 = arith.truncf %65 : vector<4x8x8xf32> to vector<4x8x8xbf16>
    %67 = vector.extract_strided_slice %45 {offsets = [0, 32], sizes = [8, 32], strides = [1, 1]} : vector<8x64xf32> to vector<8x32xf32>
    %68 = vector.extract_strided_slice %67 {offsets = [0, 0], sizes = [8, 8], strides = [1, 1]} : vector<8x32xf32> to vector<8x8xf32>
    %69 = vector.extract_strided_slice %67 {offsets = [0, 8], sizes = [8, 8], strides = [1, 1]} : vector<8x32xf32> to vector<8x8xf32>
    %70 = vector.extract_strided_slice %67 {offsets = [0, 16], sizes = [8, 8], strides = [1, 1]} : vector<8x32xf32> to vector<8x8xf32>
    %71 = vector.extract_strided_slice %67 {offsets = [0, 24], sizes = [8, 8], strides = [1, 1]} : vector<8x32xf32> to vector<8x8xf32>
    %72 = vector.shape_cast %68 : vector<8x8xf32> to vector<1x8x8xf32>
    %73 = vector.shape_cast %69 : vector<8x8xf32> to vector<1x8x8xf32>
    %74 = vector.shape_cast %70 : vector<8x8xf32> to vector<1x8x8xf32>
    %75 = vector.shape_cast %71 : vector<8x8xf32> to vector<1x8x8xf32>
    %76 = tpu.concatenate %72, %73, %74, %75 in 0 : vector<1x8x8xf32>, vector<1x8x8xf32>, vector<1x8x8xf32>, vector<1x8x8xf32> -> vector<4x8x8xf32>
    %77 = arith.truncf %76 : vector<4x8x8xf32> to vector<4x8x8xbf16>
    "tpu.trace_start"() <{level = 10 : i32, message = "hqd,hkd->hqk"}> : () -> ()
    %cst_22 = arith.constant dense<0.000000e+00> : vector<4x8x8xf32>
    %78 = tpu.matmul %55, %66, %cst_22 {dimension_numbers = #tpu.dot_dimension_numbers<[2], [2], [1], [1], [0, 0, 0, 1, 1, 1], [0], [0]>} : vector<4x8x8xbf16>, vector<4x8x8xbf16>, vector<4x8x8xf32> -> vector<4x8x8xf32>
    "tpu.trace_stop"() : () -> ()
    %79 = vector.shape_cast %9 : vector<8x8xf32> to vector<1x8x8xf32>
    %80 = vector.broadcast %79 : vector<1x8x8xf32> to vector<4x8x8xf32>
    %81 = arith.addf %78, %80 : vector<4x8x8xf32>
    %cst_23 = arith.constant dense<0xFF800000> : vector<4x8xf32>
    %82 = vector.multi_reduction <maximumf>, %81, %cst_23 [2] : vector<4x8x8xf32> to vector<4x8xf32>
    %83 = vector.shape_cast %82 : vector<4x8xf32> to vector<4x8x1xf32>
    %84 = vector.broadcast %83 : vector<4x8x1xf32> to vector<4x8x8xf32>
    %85 = arith.subf %81, %84 : vector<4x8x8xf32>
    %86 = math.exp %85 : vector<4x8x8xf32>
    %cst_24 = arith.constant dense<0.000000e+00> : vector<4x8xf32>
    %87 = vector.multi_reduction <add>, %86, %cst_24 [2] : vector<4x8x8xf32> to vector<4x8xf32>
    %88 = vector.shape_cast %87 : vector<4x8xf32> to vector<4x8x1xf32>
    %89 = arith.truncf %86 : vector<4x8x8xf32> to vector<4x8x8xbf16>
    "tpu.trace_start"() <{level = 10 : i32, message = "hqk,hkd->hqd"}> : () -> ()
    %cst_25 = arith.constant dense<0.000000e+00> : vector<4x8x8xf32>
    %90 = tpu.matmul %89, %77, %cst_25 {dimension_numbers = #tpu.dot_dimension_numbers<[2], [1], [1], [2], [0, 0, 0, 1, 1, 2], [0], [0]>} : vector<4x8x8xbf16>, vector<4x8x8xbf16>, vector<4x8x8xf32> -> vector<4x8x8xf32>
    "tpu.trace_stop"() : () -> ()
    %91 = tpu.reciprocal %88 {approx = true} : vector<4x8x1xf32> -> vector<4x8x1xf32>
    %92 = vector.broadcast %91 : vector<4x8x1xf32> to vector<4x8x8xf32>
    %93 = arith.mulf %90, %92 : vector<4x8x8xf32>
    %94 = vector.extract_strided_slice %93 {offsets = [0, 0, 0], sizes = [1, 8, 8], strides = [1, 1, 1]} : vector<4x8x8xf32> to vector<1x8x8xf32>
    %95 = vector.shape_cast %94 : vector<1x8x8xf32> to vector<8x8xf32>
    %96 = vector.extract_strided_slice %93 {offsets = [1, 0, 0], sizes = [1, 8, 8], strides = [1, 1, 1]} : vector<4x8x8xf32> to vector<1x8x8xf32>
    %97 = vector.shape_cast %96 : vector<1x8x8xf32> to vector<8x8xf32>
    %98 = vector.extract_strided_slice %93 {offsets = [2, 0, 0], sizes = [1, 8, 8], strides = [1, 1, 1]} : vector<4x8x8xf32> to vector<1x8x8xf32>
    %99 = vector.shape_cast %98 : vector<1x8x8xf32> to vector<8x8xf32>
    %100 = vector.extract_strided_slice %93 {offsets = [3, 0, 0], sizes = [1, 8, 8], strides = [1, 1, 1]} : vector<4x8x8xf32> to vector<1x8x8xf32>
    %101 = vector.shape_cast %100 : vector<1x8x8xf32> to vector<8x8xf32>
    %102 = tpu.concatenate %95, %97, %99, %101 in 1 : vector<8x8xf32>, vector<8x8xf32>, vector<8x8xf32>, vector<8x8xf32> -> vector<8x32xf32>
    %c0_26 = arith.constant 0 : index
    %c0_27 = arith.constant 0 : index
    %c0_28 = arith.constant 0 : index
    %103 = vector.load %arg8[%c0_26, %c0_27, %c0_28] : memref<1x32x32xbf16, #tpu.memory_space<vmem>>, vector<1x32x32xbf16>
    %104 = vector.shape_cast %103 : vector<1x32x32xbf16> to vector<32x32xbf16>
    %105 = arith.truncf %102 : vector<8x32xf32> to vector<8x32xbf16>
    %cst_29 = arith.constant dense<0.000000e+00> : vector<8x32xf32>
    %106 = tpu.matmul %105, %104, %cst_29 {dimension_numbers = #tpu.dot_dimension_numbers<[1], [1], [0], [0], [0, 0, 1, 0], [], []>} : vector<8x32xbf16>, vector<32x32xbf16>, vector<8x32xf32> -> vector<8x32xf32>
    %107 = arith.addf %3, %106 : vector<8x32xf32>
    %c0_30 = arith.constant 0 : index
    %c0_31 = arith.constant 0 : index
    %c0_32 = arith.constant 0 : index
    %108 = vector.load %arg9[%c0_30, %c0_31, %c0_32] : memref<1x32x32xbf16, #tpu.memory_space<vmem>>, vector<1x32x32xbf16>
    %109 = vector.shape_cast %108 : vector<1x32x32xbf16> to vector<32x32xbf16>
    %110 = arith.truncf %107 : vector<8x32xf32> to vector<8x32xbf16>
    %cst_33 = arith.constant dense<0.000000e+00> : vector<8x32xf32>
    %111 = tpu.matmul %110, %109, %cst_33 {dimension_numbers = #tpu.dot_dimension_numbers<[1], [1], [0], [0], [0, 0, 1, 0], [], []>} : vector<8x32xbf16>, vector<32x32xbf16>, vector<8x32xf32> -> vector<8x32xf32>
    %c0_34 = arith.constant 0 : index
    %c0_35 = arith.constant 0 : index
    %c0_36 = arith.constant 0 : index
    %112 = vector.load %arg10[%c0_34, %c0_35, %c0_36] : memref<1x1x32xf32, #tpu.memory_space<vmem>>, vector<1x1x32xf32>
    %113 = vector.shape_cast %112 : vector<1x1x32xf32> to vector<1x32xf32>
    %114 = vector.broadcast %113 : vector<1x32xf32> to vector<8x32xf32>
    %115 = arith.addf %111, %114 : vector<8x32xf32>
    %cst_37 = arith.constant 0.000000e+00 : f32
    %116 = vector.broadcast %cst_37 : f32 to vector<8x32xf32>
    %117 = arith.maximumf %115, %116 : vector<8x32xf32>
    %c0_38 = arith.constant 0 : index
    %c0_39 = arith.constant 0 : index
    %c0_40 = arith.constant 0 : index
    %118 = vector.load %arg11[%c0_38, %c0_39, %c0_40] : memref<1x32x32xbf16, #tpu.memory_space<vmem>>, vector<1x32x32xbf16>
    %119 = vector.shape_cast %118 : vector<1x32x32xbf16> to vector<32x32xbf16>
    %120 = arith.truncf %117 : vector<8x32xf32> to vector<8x32xbf16>
    %cst_41 = arith.constant dense<0.000000e+00> : vector<8x32xf32>
    %121 = tpu.matmul %120, %119, %cst_41 {dimension_numbers = #tpu.dot_dimension_numbers<[1], [1], [0], [0], [0, 0, 1, 0], [], []>} : vector<8x32xbf16>, vector<32x32xbf16>, vector<8x32xf32> -> vector<8x32xf32>
    %122 = arith.addf %107, %121 : vector<8x32xf32>
    %c0_42 = arith.constant 0 : index
    %c0_43 = arith.constant 0 : index
    %c0_44 = arith.constant 0 : index
    %123 = vector.load %arg12[%c0_42, %c0_43, %c0_44] : memref<1x1x32xf32, #tpu.memory_space<vmem>>, vector<1x1x32xf32>
    %124 = vector.shape_cast %123 : vector<1x1x32xf32> to vector<1x32xf32>
    %125 = vector.broadcast %124 : vector<1x32xf32> to vector<8x32xf32>
    %126 = arith.addf %122, %125 : vector<8x32xf32>
    %c0_45 = arith.constant 0 : index
    %c0_46 = arith.constant 0 : index
    %127 = vector.load %arg16[%c0_45, %c0_46] : memref<8x32xf32, #tpu.memory_space<vmem>>, vector<8x32xf32>
    tpu.vector_store %arg16[%c0_45, %c0_46], %126 {strides = array<i32>} : memref<8x32xf32, #tpu.memory_space<vmem>>, vector<8x32xf32>,
    %c1_i32 = arith.constant 1 : i32
    %128 = arith.cmpi eq, %arg1, %c1_i32 : i32
    %129 = arith.extui %128 : i1 to i32
    %c0_i32_47 = arith.constant 0 : i32
    %130 = arith.cmpi ne, %129, %c0_i32_47 : i32
    scf.if %130 {
      %c0_48 = arith.constant 0 : index
      %c0_49 = arith.constant 0 : index
      %131 = vector.load %arg13[%c0_48, %c0_49] : memref<1x32xf32, #tpu.memory_space<vmem>>, vector<1x32xf32>
      %132 = vector.shape_cast %131 : vector<1x32xf32> to vector<32xf32>
      %c0_50 = arith.constant 0 : index
      %c0_51 = arith.constant 0 : index
      %133 = vector.load %arg14[%c0_50, %c0_51] : memref<1x32xf32, #tpu.memory_space<vmem>>, vector<1x32xf32>
      %134 = vector.shape_cast %133 : vector<1x32xf32> to vector<32xf32>
      %cst_52 = arith.constant dense<0.000000e+00> : vector<8xf32>
      %135 = vector.multi_reduction <add>, %126, %cst_52 [1] : vector<8x32xf32> to vector<8xf32>
      %136 = vector.shape_cast %135 : vector<8xf32> to vector<8x1xf32>
      %cst_53 = arith.constant 3.200000e+01 : f32
      %137 = vector.broadcast %cst_53 : f32 to vector<8x1xf32>
      %138 = arith.divf %136, %137 : vector<8x1xf32>
      %139 = vector.broadcast %138 : vector<8x1xf32> to vector<8x32xf32>
      %140 = arith.subf %126, %139 : vector<8x32xf32>
      %141 = arith.mulf %140, %140 : vector<8x32xf32>
      %cst_54 = arith.constant dense<0.000000e+00> : vector<8xf32>
      %142 = vector.multi_reduction <add>, %141, %cst_54 [1] : vector<8x32xf32> to vector<8xf32>
      %143 = vector.shape_cast %142 : vector<8xf32> to vector<8x1xf32>
      %cst_55 = arith.constant 3.200000e+01 : f32
      %144 = vector.broadcast %cst_55 : f32 to vector<8x1xf32>
      %145 = arith.divf %143, %144 : vector<8x1xf32>
      %146 = vector.broadcast %138 : vector<8x1xf32> to vector<8x32xf32>
      %147 = arith.subf %126, %146 : vector<8x32xf32>
      %cst_56 = arith.constant 9.99999974E-6 : f32
      %148 = vector.broadcast %cst_56 : f32 to vector<8x1xf32>
      %149 = arith.addf %145, %148 : vector<8x1xf32>
      %150 = math.rsqrt %149 : vector<8x1xf32>
      %151 = vector.broadcast %150 : vector<8x1xf32> to vector<8x32xf32>
      %152 = arith.mulf %147, %151 : vector<8x32xf32>
      %153 = vector.shape_cast %132 : vector<32xf32> to vector<1x32xf32>
      %154 = vector.broadcast %153 : vector<1x32xf32> to vector<8x32xf32>
      %155 = arith.mulf %152, %154 : vector<8x32xf32>
      %156 = vector.shape_cast %134 : vector<32xf32> to vector<1x32xf32>
      %157 = vector.broadcast %156 : vector<1x32xf32> to vector<8x32xf32>
      %158 = arith.addf %155, %157 : vector<8x32xf32>
      %c0_57 = arith.constant 0 : index
      %c0_58 = arith.constant 0 : index
      %c0_59 = arith.constant 0 : index
      %159 = vector.load %arg15[%c0_57, %c0_58, %c0_59] : memref<1x8x32xf32, #tpu.memory_space<vmem>>, vector<1x8x32xf32>
      %160 = vector.shape_cast %159 : vector<1x8x32xf32> to vector<8x32xf32>
      %161 = vector.shape_cast %158 : vector<8x32xf32> to vector<1x8x32xf32>
      tpu.vector_store %arg15[%c0_57, %c0_58, %c0_59], %161 {strides = array<i32>} : memref<1x8x32xf32, #tpu.memory_space<vmem>>, vector<1x8x32xf32>,
    } else {
    }
    return
  }
  func.func @transform_0(%arg0: i32, %arg1: i32) -> (i32, i32, i32) {
    %c0_i32 = arith.constant 0 : i32
    %c0_i32_0 = arith.constant 0 : i32
    %c0_i32_1 = arith.constant 0 : i32
    return %arg0, %c0_i32, %c0_i32_0 : i32, i32, i32
  }
  func.func @transform_1(%arg0: i32, %arg1: i32) -> (i32, i32) {
    %c0_i32 = arith.constant 0 : i32
    %c0_i32_0 = arith.constant 0 : i32
    %c0_i32_1 = arith.constant 0 : i32
    return %c0_i32, %c0_i32_0 : i32, i32
  }
  func.func @transform_2(%arg0: i32, %arg1: i32) -> (i32, i32, i32) {
    %c0_i32 = arith.constant 0 : i32
    %c0_i32_0 = arith.constant 0 : i32
    %c0_i32_1 = arith.constant 0 : i32
    return %arg1, %c0_i32, %c0_i32_0 : i32, i32, i32
  }
  func.func @transform_3(%arg0: i32, %arg1: i32) -> (i32, i32, i32) {
    %c0_i32 = arith.constant 0 : i32
    %c0_i32_0 = arith.constant 0 : i32
    %c0_i32_1 = arith.constant 0 : i32
    return %arg1, %c0_i32, %c0_i32_0 : i32, i32, i32
  }
  func.func @transform_4(%arg0: i32, %arg1: i32) -> (i32, i32, i32) {
    %c0_i32 = arith.constant 0 : i32
    %c0_i32_0 = arith.constant 0 : i32
    %c0_i32_1 = arith.constant 0 : i32
    return %arg1, %c0_i32, %c0_i32_0 : i32, i32, i32
  }
  func.func @transform_5(%arg0: i32, %arg1: i32) -> (i32, i32, i32) {
    %c0_i32 = arith.constant 0 : i32
    %c0_i32_0 = arith.constant 0 : i32
    %c0_i32_1 = arith.constant 0 : i32
    return %arg1, %c0_i32, %c0_i32_0 : i32, i32, i32
  }
  func.func @transform_6(%arg0: i32, %arg1: i32) -> (i32, i32, i32) {
    %c0_i32 = arith.constant 0 : i32
    %c0_i32_0 = arith.constant 0 : i32
    %c0_i32_1 = arith.constant 0 : i32
    return %arg1, %c0_i32, %c0_i32_0 : i32, i32, i32
  }
  func.func @transform_7(%arg0: i32, %arg1: i32) -> (i32, i32, i32) {
    %c0_i32 = arith.constant 0 : i32
    %c0_i32_0 = arith.constant 0 : i32
    %c0_i32_1 = arith.constant 0 : i32
    return %arg1, %c0_i32, %c0_i32_0 : i32, i32, i32
  }
  func.func @transform_8(%arg0: i32, %arg1: i32) -> (i32, i32, i32) {
    %c0_i32 = arith.constant 0 : i32
    %c0_i32_0 = arith.constant 0 : i32
    %c0_i32_1 = arith.constant 0 : i32
    return %arg1, %c0_i32, %c0_i32_0 : i32, i32, i32
  }
  func.func @transform_9(%arg0: i32, %arg1: i32) -> (i32, i32, i32) {
    %c0_i32 = arith.constant 0 : i32
    %c0_i32_0 = arith.constant 0 : i32
    %c0_i32_1 = arith.constant 0 : i32
    return %arg1, %c0_i32, %c0_i32_0 : i32, i32, i32
  }
  func.func @transform_10(%arg0: i32, %arg1: i32) -> (i32, i32, i32) {
    %c0_i32 = arith.constant 0 : i32
    %c0_i32_0 = arith.constant 0 : i32
    %c0_i32_1 = arith.constant 0 : i32
    return %arg1, %c0_i32, %c0_i32_0 : i32, i32, i32
  }
  func.func @transform_11(%arg0: i32, %arg1: i32) -> (i32, i32) {
    %c0_i32 = arith.constant 0 : i32
    %c0_i32_0 = arith.constant 0 : i32
    %c0_i32_1 = arith.constant 0 : i32
    return %c0_i32, %c0_i32_0 : i32, i32
  }
  func.func @transform_12(%arg0: i32, %arg1: i32) -> (i32, i32) {
    %c0_i32 = arith.constant 0 : i32
    %c0_i32_0 = arith.constant 0 : i32
    %c0_i32_1 = arith.constant 0 : i32
    return %c0_i32, %c0_i32_0 : i32, i32
  }
  func.func @transform_13(%arg0: i32, %arg1: i32) -> (i32, i32, i32) {
    %c0_i32 = arith.constant 0 : i32
    %c0_i32_0 = arith.constant 0 : i32
    %c0_i32_1 = arith.constant 0 : i32
    return %arg0, %c0_i32, %c0_i32_0 : i32, i32, i32
  }
}

</mosaic_0001>

<llo_original>
// kernel: tpu_custom_call.1
$region0: #{tpu_custom_call.1}
  #allocation0 [shape = 'u32[]', space=smem, size = 0x4, offset = 0x4, fixed_abs, tag = 'smem constant byte address 0x4 - core index']
  #allocation1 [shape = 'u32[144,128]{1,0:T(1,128)}', space=vmem, size = 0x12000, scoped, tag = 'internal scratch']
  #allocation2 [shape = 'f32[8,32]{1,0:T(8,128)}', space=vmem, size = 0x1000, scoped, tag = 'scratch operand']
  %s0 = inlined_call_operand.hbm [shape: f32[2,8,32], index: 0, kind: input, shape index: {}]
  %s1 = inlined_call_operand.hbm [shape: f32[8,32], index: 1, kind: input, shape index: {}]
  %s2 = inlined_call_operand.vmem [shape: f32[2,1,32], index: 2, kind: input, shape index: {}]
  %s3 = inlined_call_operand.hbm [shape: f32[2,1,32], index: 3, kind: input, shape index: {}]
  %s4 = inlined_call_operand.vmem [shape: bf16[2,32,32], index: 4, kind: input, shape index: {}]
  %s5 = inlined_call_operand.vmem [shape: bf16[2,64,32], index: 5, kind: input, shape index: {}]
  %s6 = inlined_call_operand.vmem [shape: bf16[2,32,32], index: 6, kind: input, shape index: {}]
  %s7 = inlined_call_operand.vmem [shape: bf16[2,32,32], index: 7, kind: input, shape index: {}]
  %s8 = inlined_call_operand.hbm [shape: f32[2,1,32], index: 8, kind: input, shape index: {}]
  %s9 = inlined_call_operand.vmem [shape: bf16[2,32,32], index: 9, kind: input, shape index: {}]
  %s10 = inlined_call_operand.vmem [shape: f32[2,1,32], index: 10, kind: input, shape index: {}]
  %s11 = inlined_call_operand.vmem [shape: f32[1,32], index: 11, kind: input, shape index: {}]
  %s12 = inlined_call_operand.vmem [shape: f32[1,32], index: 12, kind: input, shape index: {}]
  %s13 = inlined_call_operand.hbm [shape: f32[2,8,32], index: 13, kind: output, shape index: {}]
  %s14 = sld [smem:[#allocation0]]
  $region109: #{tpu_custom_call.1} parent=0
    _
  %s16 = ssub.s32 1, %s14
  %s17 = scalar_select 0, %s16, %s14
  $region1: #{tpu_custom_call.1} parent=0
    #allocation3 [shape = 'u8[8192]{0}', space=vmem, size = 0x2000, scoped, tag = 'input window, operand 0']
    #allocation4 [shape = 's32[2]{0}', space=sflag, size = 0x8, scoped, tag = 'scoped memory for tpu_custom_call.1']
    #allocation5 [shape = 's32[2]{0}', space=sflag, size = 0x8, scoped, tag = 'scoped memory for tpu_custom_call.1']
    #allocation6 [shape = 'u8[4096]{0}', space=vmem, size = 0x1000, scoped, tag = 'input window, operand 1, single buffered']
    #allocation7 [shape = 's32[1]{0}', space=sflag, size = 0x4, scoped, tag = 'scoped memory for tpu_custom_call.1']
    #allocation8 [shape = 'u8[1024]{0}', space=vmem, size = 0x400, scoped, tag = 'input window, operand 3']
    #allocation9 [shape = 'u8[1024]{0}', space=vmem, size = 0x400, scoped, tag = 'input window, operand 8']
    #allocation10 [shape = 'u8[8192]{0}', space=vmem, size = 0x2000, scoped, tag = 'output window, operand 0']
    %18 = vsyncpa [#allocation4], 0
    %s19 = scalar_lea.sflag [#allocation4], 1
    %20 = vsyncpa %s19, 0
    %21 = vsyncpa [#allocation7], 0
    %22 = vsyncpa [#allocation5], 0
    %s23 = scalar_lea.sflag [#allocation5], 1
    %24 = vsyncpa %s23, 0
    loop: start=0, step=1, limit=6
    $region2: #{tpu_custom_call.1} parent=1 // loop_pre_header
      _
    $region3: #{tpu_custom_call.1} parent=1 // loop_header
      %s26 = sphi 0, %s30
      %p27 = scmp.ge.s32.totalorder %s26, 6
      %s33 = sphi 0, %s45
      %s34 = sphi 0, %s41
      %s35 = sphi 0, %s33
      %s36 = sphi 0, %s34
      %s37 = sphi 0, %s35
      %s38 = sphi 0, %s36
      %s48 = sphi 0, %s50
      %s51 = sphi 0, %s48
      %s52 = sphi 0, %s51
      %s68 = sphi 0, %s52
      %s72 = sphi 0, %s72
      %s74 = sphi 0, %s72
      %s75 = sphi 0, %s74
      %s89 = sphi 0, %s75
      %s95 = sphi 0, %s97
      %s98 = sphi 0, %s95
      %s99 = sphi 0, %s98
      %s115 = sphi 0, %s99
      %s121 = sphi 0, %s123
      %s124 = sphi 0, %s121
      %s125 = sphi 0, %s124
      %s141 = sphi 0, %s125
      %s147 = sphi 0, %s149
      %s150 = sphi 0, %s147
      %s151 = sphi 0, %s150
      %s167 = sphi 0, %s151
      %s173 = sphi 0, %s175
      %s176 = sphi 0, %s173
      %s177 = sphi 0, %s176
      %s193 = sphi 0, %s177
      %s199 = sphi 0, %s201
      %s202 = sphi 0, %s199
      %s203 = sphi 0, %s202
      %s219 = sphi 0, %s203
      %s225 = sphi 0, %s227
      %s228 = sphi 0, %s225
      %s229 = sphi 0, %s228
      %s245 = sphi 0, %s229
      %s251 = sphi 0, %s253
      %s254 = sphi 0, %s251
      %s255 = sphi 0, %s254
      %s271 = sphi 0, %s255
      %s277 = sphi 0, %s279
      %s280 = sphi 0, %s277
      %s281 = sphi 0, %s280
      %s297 = sphi 0, %s281
      %s303 = sphi 0, %s305
      %s306 = sphi 0, %s303
      %s307 = sphi 0, %s306
      %s323 = sphi 0, %s307
      %s327 = sphi 0, %s327
      %s329 = sphi 0, %s327
      %s330 = sphi 0, %s329
      %s344 = sphi 0, %s330
      %s348 = sphi 0, %s348
      %s350 = sphi 0, %s348
      %s351 = sphi 0, %s350
      %s365 = sphi 0, %s351
      %s371 = sphi 0, %s373
      %s374 = sphi 0, %s371
      %s375 = sphi 0, %s374
      %s391 = sphi 0, %s375
    $region4: #{tpu_custom_call.1} parent=1 // loop_header_branch
      %29 = sbr.rel (%p27) target = $region8
    $region5: #{tpu_custom_call.1} parent=1 // loop_body
      %s31 = ssub.s32 %s26, 1
      %s32 = ssub.s32 %s26, 2
      %s39 = sadd.s32 1, %s34
      %p40 = scmp.ge.s32.totalorder %s39, 2
      %s41 = scalar_select %p40, 0, %s39
      %s42 = sadd.s32 1, %s33
      %s43 = scalar_select %p40, %s42, %s33
      %p44 = scmp.ge.s32.totalorder %s43, 2
      %s45 = scalar_select %p44, 0, %s43
      %s46 = ssub.s32 %s33, %s45
      %p47 = scmp.eq.s32.totalorder %s46, 0
      %s49 = sadd.s32 %s48, 1
      %s50 = scalar_select %p47, %s48, %s49
      %p53 = pneg %p47
      %p54 = scmp.eq.s32.totalorder %s26, 3
      %p55 = por %p53, %p54
      %p56 = scmp.ne.s32.totalorder %s48, %s51
      %p57 = scmp.eq.s32.totalorder %s26, 0
      %p58 = por %p56, %p57
      %p59 = scmp.ne.s32.totalorder %s48, %s51
      %p60 = scmp.eq.s32.totalorder %s31, 3
      %p61 = por %p59, %p60
      %p62 = scmp.ne.s32.totalorder %s51, %s52
      %p63 = scmp.eq.s32.totalorder %s31, 0
      %p64 = por %p62, %p63
      %p65 = scmp.ne.s32.totalorder %s51, %s52
      %p66 = scmp.eq.s32.totalorder %s32, 3
      %p67 = por %p65, %p66
      %p69 = scmp.ne.s32.totalorder %s52, %s68
      %p70 = scmp.eq.s32.totalorder %s32, 0
      %p71 = por %p69, %p70
      %s73 = sadd.s32 %s72, 1
      %p76 = scmp.eq.s32.totalorder %s26, 3
      %p77 = scmp.ne.s32.totalorder %s72, %s74
      %p78 = scmp.eq.s32.totalorder %s26, 0
      %p79 = por %p77, %p78
      %p80 = scmp.ne.s32.totalorder %s72, %s74
      %p81 = scmp.eq.s32.totalorder %s31, 3
      %p82 = por %p80, %p81
      %p83 = scmp.ne.s32.totalorder %s74, %s75
      %p84 = scmp.eq.s32.totalorder %s31, 0
      %p85 = por %p83, %p84
      %p86 = scmp.ne.s32.totalorder %s74, %s75
      %p87 = scmp.eq.s32.totalorder %s32, 3
      %p88 = por %p86, %p87
      %p90 = scmp.ne.s32.totalorder %s75, %s89
      %p91 = scmp.eq.s32.totalorder %s32, 0
      %p92 = por %p90, %p91
      %s93 = ssub.s32 %s34, %s41
      %p94 = scmp.eq.s32.totalorder %s93, 0
      %s96 = sadd.s32 %s95, 1
      %s97 = scalar_select %p94, %s95, %s96
      %p100 = pneg %p94
      %p101 = scmp.eq.s32.totalorder %s26, 3
      %p102 = por %p100, %p101
      %p103 = scmp.ne.s32.totalorder %s95, %s98
      %p104 = scmp.eq.s32.totalorder %s26, 0
      %p105 = por %p103, %p104
      %p106 = scmp.ne.s32.totalorder %s95, %s98
      %p107 = scmp.eq.s32.totalorder %s31, 3
      %p108 = por %p106, %p107
      %p109 = scmp.ne.s32.totalorder %s98, %s99
      %p110 = scmp.eq.s32.totalorder %s31, 0
      %p111 = por %p109, %p110
      %p112 = scmp.ne.s32.totalorder %s98, %s99
      %p113 = scmp.eq.s32.totalorder %s32, 3
      %p114 = por %p112, %p113
      %p116 = scmp.ne.s32.totalorder %s99, %s115
      %p117 = scmp.eq.s32.totalorder %s32, 0
      %p118 = por %p116, %p117
      %s119 = ssub.s32 %s34, %s41
      %p120 = scmp.eq.s32.totalorder %s119, 0
      %s122 = sadd.s32 %s121, 1
      %s123 = scalar_select %p120, %s121, %s122
      %p126 = pneg %p120
      %p127 = scmp.eq.s32.totalorder %s26, 3
      %p128 = por %p126, %p127
      %p129 = scmp.ne.s32.totalorder %s121, %s124
      %p130 = scmp.eq.s32.totalorder %s26, 0
      %p131 = por %p129, %p130
      %p132 = scmp.ne.s32.totalorder %s121, %s124
      %p133 = scmp.eq.s32.totalorder %s31, 3
      %p134 = por %p132, %p133
      %p135 = scmp.ne.s32.totalorder %s124, %s125
      %p136 = scmp.eq.s32.totalorder %s31, 0
      %p137 = por %p135, %p136
      %p138 = scmp.ne.s32.totalorder %s124, %s125
      %p139 = scmp.eq.s32.totalorder %s32, 3
      %p140 = por %p138, %p139
      %p142 = scmp.ne.s32.totalorder %s125, %s141
      %p143 = scmp.eq.s32.totalorder %s32, 0
      %p144 = por %p142, %p143
      %s145 = ssub.s32 %s34, %s41
      %p146 = scmp.eq.s32.totalorder %s145, 0
      %s148 = sadd.s32 %s147, 1
      %s149 = scalar_select %p146, %s147, %s148
      %p152 = pneg %p146
      %p153 = scmp.eq.s32.totalorder %s26, 3
      %p154 = por %p152, %p153
      %p155 = scmp.ne.s32.totalorder %s147, %s150
      %p156 = scmp.eq.s32.totalorder %s26, 0
      %p157 = por %p155, %p156
      %p158 = scmp.ne.s32.totalorder %s147, %s150
      %p159 = scmp.eq.s32.totalorder %s31, 3
      %p160 = por %p158, %p159
      %p161 = scmp.ne.s32.totalorder %s150, %s151
      %p162 = scmp.eq.s32.totalorder %s31, 0
      %p163 = por %p161, %p162
      %p164 = scmp.ne.s32.totalorder %s150, %s151
      %p165 = scmp.eq.s32.totalorder %s32, 3
      %p166 = por %p164, %p165
      %p168 = scmp.ne.s32.totalorder %s151, %s167
      %p169 = scmp.eq.s32.totalorder %s32, 0
      %p170 = por %p168, %p169
      %s171 = ssub.s32 %s34, %s41
      %p172 = scmp.eq.s32.totalorder %s171, 0
      %s174 = sadd.s32 %s173, 1
      %s175 = scalar_select %p172, %s173, %s174
      %p178 = pneg %p172
      %p179 = scmp.eq.s32.totalorder %s26, 3
      %p180 = por %p178, %p179
      %p181 = scmp.ne.s32.totalorder %s173, %s176
      %p182 = scmp.eq.s32.totalorder %s26, 0
      %p183 = por %p181, %p182
      %p184 = scmp.ne.s32.totalorder %s173, %s176
      %p185 = scmp.eq.s32.totalorder %s31, 3
      %p186 = por %p184, %p185
      %p187 = scmp.ne.s32.totalorder %s176, %s177
      %p188 = scmp.eq.s32.totalorder %s31, 0
      %p189 = por %p187, %p188
      %p190 = scmp.ne.s32.totalorder %s176, %s177
      %p191 = scmp.eq.s32.totalorder %s32, 3
      %p192 = por %p190, %p191
      %p194 = scmp.ne.s32.totalorder %s177, %s193
      %p195 = scmp.eq.s32.totalorder %s32, 0
      %p196 = por %p194, %p195
      %s197 = ssub.s32 %s34, %s41
      %p198 = scmp.eq.s32.totalorder %s197, 0
      %s200 = sadd.s32 %s199, 1
      %s201 = scalar_select %p198, %s199, %s200
      %p204 = pneg %p198
      %p205 = scmp.eq.s32.totalorder %s26, 3
      %p206 = por %p204, %p205
      %p207 = scmp.ne.s32.totalorder %s199, %s202
      %p208 = scmp.eq.s32.totalorder %s26, 0
      %p209 = por %p207, %p208
      %p210 = scmp.ne.s32.totalorder %s199, %s202
      %p211 = scmp.eq.s32.totalorder %s31, 3
      %p212 = por %p210, %p211
      %p213 = scmp.ne.s32.totalorder %s202, %s203
      %p214 = scmp.eq.s32.totalorder %s31, 0
      %p215 = por %p213, %p214
      %p216 = scmp.ne.s32.totalorder %s202, %s203
      %p217 = scmp.eq.s32.totalorder %s32, 3
      %p218 = por %p216, %p217
      %p220 = scmp.ne.s32.totalorder %s203, %s219
      %p221 = scmp.eq.s32.totalorder %s32, 0
      %p222 = por %p220, %p221
      %s223 = ssub.s32 %s34, %s41
      %p224 = scmp.eq.s32.totalorder %s223, 0
      %s226 = sadd.s32 %s225, 1
      %s227 = scalar_select %p224, %s225, %s226
      %p230 = pneg %p224
      %p231 = scmp.eq.s32.totalorder %s26, 3
      %p232 = por %p230, %p231
      %p233 = scmp.ne.s32.totalorder %s225, %s228
      %p234 = scmp.eq.s32.totalorder %s26, 0
      %p235 = por %p233, %p234
      %p236 = scmp.ne.s32.totalorder %s225, %s228
      %p237 = scmp.eq.s32.totalorder %s31, 3
      %p238 = por %p236, %p237
      %p239 = scmp.ne.s32.totalorder %s228, %s229
      %p240 = scmp.eq.s32.totalorder %s31, 0
      %p241 = por %p239, %p240
      %p242 = scmp.ne.s32.totalorder %s228, %s229
      %p243 = scmp.eq.s32.totalorder %s32, 3
      %p244 = por %p242, %p243
      %p246 = scmp.ne.s32.totalorder %s229, %s245
      %p247 = scmp.eq.s32.totalorder %s32, 0
      %p248 = por %p246, %p247
      %s249 = ssub.s32 %s34, %s41
      %p250 = scmp.eq.s32.totalorder %s249, 0
      %s252 = sadd.s32 %s251, 1
      %s253 = scalar_select %p250, %s251, %s252
      %p256 = pneg %p250
      %p257 = scmp.eq.s32.totalorder %s26, 3
      %p258 = por %p256, %p257
      %p259 = scmp.ne.s32.totalorder %s251, %s254
      %p260 = scmp.eq.s32.totalorder %s26, 0
      %p261 = por %p259, %p260
      %p262 = scmp.ne.s32.totalorder %s251, %s254
      %p263 = scmp.eq.s32.totalorder %s31, 3
      %p264 = por %p262, %p263
      %p265 = scmp.ne.s32.totalorder %s254, %s255
      %p266 = scmp.eq.s32.totalorder %s31, 0
      %p267 = por %p265, %p266
      %p268 = scmp.ne.s32.totalorder %s254, %s255
      %p269 = scmp.eq.s32.totalorder %s32, 3
      %p270 = por %p268, %p269
      %p272 = scmp.ne.s32.totalorder %s255, %s271
      %p273 = scmp.eq.s32.totalorder %s32, 0
      %p274 = por %p272, %p273
      %s275 = ssub.s32 %s34, %s41
      %p276 = scmp.eq.s32.totalorder %s275, 0
      %s278 = sadd.s32 %s277, 1
      %s279 = scalar_select %p276, %s277, %s278
      %p282 = pneg %p276
      %p283 = scmp.eq.s32.totalorder %s26, 3
      %p284 = por %p282, %p283
      %p285 = scmp.ne.s32.totalorder %s277, %s280
      %p286 = scmp.eq.s32.totalorder %s26, 0
      %p287 = por %p285, %p286
      %p288 = scmp.ne.s32.totalorder %s277, %s280
      %p289 = scmp.eq.s32.totalorder %s31, 3
      %p290 = por %p288, %p289
      %p291 = scmp.ne.s32.totalorder %s280, %s281
      %p292 = scmp.eq.s32.totalorder %s31, 0
      %p293 = por %p291, %p292
      %p294 = scmp.ne.s32.totalorder %s280, %s281
      %p295 = scmp.eq.s32.totalorder %s32, 3
      %p296 = por %p294, %p295
      %p298 = scmp.ne.s32.totalorder %s281, %s297
      %p299 = scmp.eq.s32.totalorder %s32, 0
      %p300 = por %p298, %p299
      %s301 = ssub.s32 %s34, %s41
      %p302 = scmp.eq.s32.totalorder %s301, 0
      %s304 = sadd.s32 %s303, 1
      %s305 = scalar_select %p302, %s303, %s304
      %p308 = pneg %p302
      %p309 = scmp.eq.s32.totalorder %s26, 3
      %p310 = por %p308, %p309
      %p311 = scmp.ne.s32.totalorder %s303, %s306
      %p312 = scmp.eq.s32.totalorder %s26, 0
      %p313 = por %p311, %p312
      %p314 = scmp.ne.s32.totalorder %s303, %s306
      %p315 = scmp.eq.s32.totalorder %s31, 3
      %p316 = por %p314, %p315
      %p317 = scmp.ne.s32.totalorder %s306, %s307
      %p318 = scmp.eq.s32.totalorder %s31, 0
      %p319 = por %p317, %p318
      %p320 = scmp.ne.s32.totalorder %s306, %s307
      %p321 = scmp.eq.s32.totalorder %s32, 3
      %p322 = por %p320, %p321
      %p324 = scmp.ne.s32.totalorder %s307, %s323
      %p325 = scmp.eq.s32.totalorder %s32, 0
      %p326 = por %p324, %p325
      %s328 = sadd.s32 %s327, 1
      %p331 = scmp.eq.s32.totalorder %s26, 3
      %p332 = scmp.ne.s32.totalorder %s327, %s329
      %p333 = scmp.eq.s32.totalorder %s26, 0
      %p334 = por %p332, %p333
      %p335 = scmp.ne.s32.totalorder %s327, %s329
      %p336 = scmp.eq.s32.totalorder %s31, 3
      %p337 = por %p335, %p336
      %p338 = scmp.ne.s32.totalorder %s329, %s330
      %p339 = scmp.eq.s32.totalorder %s31, 0
      %p340 = por %p338, %p339
      %p341 = scmp.ne.s32.totalorder %s329, %s330
      %p342 = scmp.eq.s32.totalorder %s32, 3
      %p343 = por %p341, %p342
      %p345 = scmp.ne.s32.totalorder %s330, %s344
      %p346 = scmp.eq.s32.totalorder %s32, 0
      %p347 = por %p345, %p346
      %s349 = sadd.s32 %s348, 1
      %p352 = scmp.eq.s32.totalorder %s26, 3
      %p353 = scmp.ne.s32.totalorder %s348, %s350
      %p354 = scmp.eq.s32.totalorder %s26, 0
      %p355 = por %p353, %p354
      %p356 = scmp.ne.s32.totalorder %s348, %s350
      %p357 = scmp.eq.s32.totalorder %s31, 3
      %p358 = por %p356, %p357
      %p359 = scmp.ne.s32.totalorder %s350, %s351
      %p360 = scmp.eq.s32.totalorder %s31, 0
      %p361 = por %p359, %p360
      %p362 = scmp.ne.s32.totalorder %s350, %s351
      %p363 = scmp.eq.s32.totalorder %s32, 3
      %p364 = por %p362, %p363
      %p366 = scmp.ne.s32.totalorder %s351, %s365
      %p367 = scmp.eq.s32.totalorder %s32, 0
      %p368 = por %p366, %p367
      %s369 = ssub.s32 %s33, %s45
      %p370 = scmp.eq.s32.totalorder %s369, 0
      %s372 = sadd.s32 %s371, 1
      %s373 = scalar_select %p370, %s371, %s372
      %p376 = pneg %p370
      %p377 = scmp.eq.s32.totalorder %s26, 3
      %p378 = por %p376, %p377
      %p379 = scmp.ne.s32.totalorder %s371, %s374
      %p380 = scmp.eq.s32.totalorder %s26, 0
      %p381 = por %p379, %p380
      %p382 = scmp.ne.s32.totalorder %s371, %s374
      %p383 = scmp.eq.s32.totalorder %s31, 3
      %p384 = por %p382, %p383
      %p385 = scmp.ne.s32.totalorder %s374, %s375
      %p386 = scmp.eq.s32.totalorder %s31, 0
      %p387 = por %p385, %p386
      %p388 = scmp.ne.s32.totalorder %s374, %s375
      %p389 = scmp.eq.s32.totalorder %s32, 3
      %p390 = por %p388, %p389
      %p392 = scmp.ne.s32.totalorder %s375, %s391
      %p393 = scmp.eq.s32.totalorder %s32, 0
      %p394 = por %p392, %p393
      %p395 = scmp.le.s32.totalorder 1, %s26
      %p396 = scmp.lt.s32.totalorder %s26, 5
      %p397 = pnand %p395, %p396
      %p398 = pneg %p397
      // Predicated region
      $region9: #{tpu_custom_call.1} parent=5 // pred_check
        _
      $region10: #{tpu_custom_call.1} parent=5 // pred_check_branch
        %400 = sbr.rel (%p397) target = $region12
      $region11: #{tpu_custom_call.1} parent=5 // pred_region
        %s401 = ssub.s32 %s26, 1
        // Predicated region
        $region13: #{tpu_custom_call.1} parent=11 // pred_check
          %p402 = pneg %p85
        $region14: #{tpu_custom_call.1} parent=11 // pred_check_branch
          %404 = sbr.rel (%p402) target = $region16
        $region15: #{tpu_custom_call.1} parent=11 // pred_region
          %s406 = ssub.s32 128, 128
          %407 = vsyncadd [#allocation7], %s406
          %s409 = sshll.u32 [#allocation6], 4
          %s410 = int_to_ptr.vmem [resolvable:$true] %s409
          %412 = dma.hbm_to_vmem [thread:$0]  %s1, 128, %s410, [#allocation7]
        $region16: #{tpu_custom_call.1} parent=11 // pred_fallthru
          _
        // Predicated region
        $region17: #{tpu_custom_call.1} parent=11 // pred_check
          %p413 = pneg %p340
        $region18: #{tpu_custom_call.1} parent=11 // pred_check_branch
          %415 = sbr.rel (%p413) target = $region20
        $region19: #{tpu_custom_call.1} parent=11 // pred_region
          _
        $region20: #{tpu_custom_call.1} parent=11 // pred_fallthru
          _
        // Predicated region
        $region21: #{tpu_custom_call.1} parent=11 // pred_check
          %p416 = pneg %p361
        $region22: #{tpu_custom_call.1} parent=11 // pred_check_branch
          %418 = sbr.rel (%p416) target = $region24
        $region23: #{tpu_custom_call.1} parent=11 // pred_region
          _
        $region24: #{tpu_custom_call.1} parent=11 // pred_fallthru
          _
      $region12: #{tpu_custom_call.1} parent=5 // pred_fallthru
        _
      %p419 = scmp.lt.s32.totalorder %s26, 4
      // Predicated region
      $region25: #{tpu_custom_call.1} parent=5 // pred_check
        %p420 = pneg %p419
      $region26: #{tpu_custom_call.1} parent=5 // pred_check_branch
        %422 = sbr.rel (%p420) target = $region28
      $region27: #{tpu_custom_call.1} parent=5 // pred_region
        // Predicated region
        $region29: #{tpu_custom_call.1} parent=27 // pred_check
          %p423 = pneg %p58
        $region30: #{tpu_custom_call.1} parent=27 // pred_check_branch
          %425 = sbr.rel (%p423) target = $region32
        $region31: #{tpu_custom_call.1} parent=27 // pred_region
          %s426 = sand.u32 %s26, 1
          %s427 = scalar_lea.sflag [#allocation4], %s426
          %s428 = sand.u32 %s48, 1
          %s429 = smul.addr %s428, 8
          %s430 = scalar_lea.vmem [#allocation3], %s429
          %s432 = ssub.s32 128, 128
          %433 = vsyncadd %s427, %s432
          %s434 = smul.addr %s33, 128
          %s435 = scalar_lea.hbm %s0, %s434
          %s437 = sshll.u32 %s430, 4
          %s438 = int_to_ptr.vmem [resolvable:$true] %s437
          %440 = dma.hbm_to_vmem [thread:$0]  %s435, 128, %s438, %s427
        $region32: #{tpu_custom_call.1} parent=27 // pred_fallthru
          _
        // Predicated region
        $region33: #{tpu_custom_call.1} parent=27 // pred_check
          %p441 = pneg %p105
        $region34: #{tpu_custom_call.1} parent=27 // pred_check_branch
          %443 = sbr.rel (%p441) target = $region36
        $region35: #{tpu_custom_call.1} parent=27 // pred_region
          %p444 = scmp.lt.s32.totalorder %s34, 1
          %s445 = scalar_select %p444, %s34, 1
          %s446 = scalar_lea.vmem %s2, %s445
        $region36: #{tpu_custom_call.1} parent=27 // pred_fallthru
          _
        // Predicated region
        $region37: #{tpu_custom_call.1} parent=27 // pred_check
          %p447 = pneg %p131
        $region38: #{tpu_custom_call.1} parent=27 // pred_check_branch
          %449 = sbr.rel (%p447) target = $region40
        $region39: #{tpu_custom_call.1} parent=27 // pred_region
          %s450 = sand.u32 %s26, 1
          %s451 = scalar_lea.sflag [#allocation4], %s450
          %s452 = sand.u32 %s121, 1
          %s453 = scalar_lea.vmem [#allocation8], %s452
          %s455 = ssub.s32 16, 16
          %456 = vsyncadd %s451, %s455
          %s457 = smul.addr %s34, 16
          %s458 = scalar_lea.hbm %s3, %s457
          %s460 = sshll.u32 %s453, 4
          %s461 = int_to_ptr.vmem [resolvable:$true] %s460
          %463 = dma.hbm_to_vmem [thread:$0]  %s458, 16, %s461, %s451
        $region40: #{tpu_custom_call.1} parent=27 // pred_fallthru
          _
        // Predicated region
        $region41: #{tpu_custom_call.1} parent=27 // pred_check
          %p464 = pneg %p157
        $region42: #{tpu_custom_call.1} parent=27 // pred_check_branch
          %466 = sbr.rel (%p464) target = $region44
        $region43: #{tpu_custom_call.1} parent=27 // pred_region
          %p467 = scmp.lt.s32.totalorder %s34, 1
          %s468 = scalar_select %p467, %s34, 1
          %s469 = smul.addr %s468, 4
          %s470 = smul.addr %s469, 4
          %s471 = scalar_lea.vmem %s4, %s470
        $region44: #{tpu_custom_call.1} parent=27 // pred_fallthru
          _
        // Predicated region
        $region45: #{tpu_custom_call.1} parent=27 // pred_check
          %p472 = pneg %p183
        $region46: #{tpu_custom_call.1} parent=27 // pred_check_branch
          %474 = sbr.rel (%p472) target = $region48
        $region47: #{tpu_custom_call.1} parent=27 // pred_region
          %p475 = scmp.lt.s32.totalorder %s34, 1
          %s476 = scalar_select %p475, %s34, 1
          %s477 = smul.addr %s476, 8
          %s478 = smul.addr %s477, 4
          %s479 = scalar_lea.vmem %s5, %s478
        $region48: #{tpu_custom_call.1} parent=27 // pred_fallthru
          _
        // Predicated region
        $region49: #{tpu_custom_call.1} parent=27 // pred_check
          %p480 = pneg %p209
        $region50: #{tpu_custom_call.1} parent=27 // pred_check_branch
          %482 = sbr.rel (%p480) target = $region52
        $region51: #{tpu_custom_call.1} parent=27 // pred_region
          %p483 = scmp.lt.s32.totalorder %s34, 1
          %s484 = scalar_select %p483, %s34, 1
          %s485 = smul.addr %s484, 4
          %s486 = smul.addr %s485, 4
          %s487 = scalar_lea.vmem %s6, %s486
        $region52: #{tpu_custom_call.1} parent=27 // pred_fallthru
          _
        // Predicated region
        $region53: #{tpu_custom_call.1} parent=27 // pred_check
          %p488 = pneg %p235
        $region54: #{tpu_custom_call.1} parent=27 // pred_check_branch
          %490 = sbr.rel (%p488) target = $region56
        $region55: #{tpu_custom_call.1} parent=27 // pred_region
          %p491 = scmp.lt.s32.totalorder %s34, 1
          %s492 = scalar_select %p491, %s34, 1
          %s493 = smul.addr %s492, 4
          %s494 = smul.addr %s493, 4
          %s495 = scalar_lea.vmem %s7, %s494
        $region56: #{tpu_custom_call.1} parent=27 // pred_fallthru
          _
        // Predicated region
        $region57: #{tpu_custom_call.1} parent=27 // pred_check
          %p496 = pneg %p261
        $region58: #{tpu_custom_call.1} parent=27 // pred_check_branch
          %498 = sbr.rel (%p496) target = $region60
        $region59: #{tpu_custom_call.1} parent=27 // pred_region
          %s499 = sand.u32 %s26, 1
          %s500 = scalar_lea.sflag [#allocation4], %s499
          %s501 = sand.u32 %s251, 1
          %s502 = scalar_lea.vmem [#allocation9], %s501
          %s504 = ssub.s32 16, 16
          %505 = vsyncadd %s500, %s504
          %s506 = smul.addr %s34, 16
          %s507 = scalar_lea.hbm %s8, %s506
          %s509 = sshll.u32 %s502, 4
          %s510 = int_to_ptr.vmem [resolvable:$true] %s509
          %512 = dma.hbm_to_vmem [thread:$0]  %s507, 16, %s510, %s500
        $region60: #{tpu_custom_call.1} parent=27 // pred_fallthru
          _
        // Predicated region
        $region61: #{tpu_custom_call.1} parent=27 // pred_check
          %p513 = pneg %p287
        $region62: #{tpu_custom_call.1} parent=27 // pred_check_branch
          %515 = sbr.rel (%p513) target = $region64
        $region63: #{tpu_custom_call.1} parent=27 // pred_region
          %p516 = scmp.lt.s32.totalorder %s34, 1
          %s517 = scalar_select %p516, %s34, 1
          %s518 = smul.addr %s517, 4
          %s519 = smul.addr %s518, 4
          %s520 = scalar_lea.vmem %s9, %s519
        $region64: #{tpu_custom_call.1} parent=27 // pred_fallthru
          _
        // Predicated region
        $region65: #{tpu_custom_call.1} parent=27 // pred_check
          %p521 = pneg %p313
        $region66: #{tpu_custom_call.1} parent=27 // pred_check_branch
          %523 = sbr.rel (%p521) target = $region68
        $region67: #{tpu_custom_call.1} parent=27 // pred_region
          %p524 = scmp.lt.s32.totalorder %s34, 1
          %s525 = scalar_select %p524, %s34, 1
          %s526 = scalar_lea.vmem %s10, %s525
        $region68: #{tpu_custom_call.1} parent=27 // pred_fallthru
          _
      $region28: #{tpu_custom_call.1} parent=5 // pred_fallthru
        _
      %p527 = scmp.le.s32.totalorder 1, %s26
      %p528 = scmp.lt.s32.totalorder %s26, 5
      %p529 = pnand %p527, %p528
      %p530 = pneg %p529
      // Predicated region
      $region69: #{tpu_custom_call.1} parent=5 // pred_check
        _
      $region70: #{tpu_custom_call.1} parent=5 // pred_check_branch
        %532 = sbr.rel (%p529) target = $region72
      $region71: #{tpu_custom_call.1} parent=5 // pred_region
        %s533 = ssub.s32 %s26, 1
        %s534 = sand.u32 %s31, 1
        %s535 = scalar_lea.sflag [#allocation4], %s534
        %s536 = sand.u32 %s51, 1
        %s537 = smul.addr %s536, 8
        %s538 = scalar_lea.vmem [#allocation3], %s537
        // Predicated region
        $region73: #{tpu_custom_call.1} parent=71 // pred_check
          %p539 = pneg %p64
        $region74: #{tpu_custom_call.1} parent=71 // pred_check_branch
          %541 = sbr.rel (%p539) target = $region76
        $region75: #{tpu_custom_call.1} parent=71 // pred_region
          %542 = dma.done %s535, 128
        $region76: #{tpu_custom_call.1} parent=71 // pred_fallthru
          _
        // Predicated region
        $region77: #{tpu_custom_call.1} parent=71 // pred_check
          %p543 = pneg %p85
        $region78: #{tpu_custom_call.1} parent=71 // pred_check_branch
          %545 = sbr.rel (%p543) target = $region80
        $region79: #{tpu_custom_call.1} parent=71 // pred_region
          %546 = dma.done [#allocation7], 128
        $region80: #{tpu_custom_call.1} parent=71 // pred_fallthru
          _
        %s547 = sand.u32 %s31, 1
        %s548 = scalar_lea.sflag [#allocation4], %s547
        %s549 = sand.u32 %s124, 1
        %s550 = scalar_lea.vmem [#allocation8], %s549
        // Predicated region
        $region81: #{tpu_custom_call.1} parent=71 // pred_check
          %p551 = pneg %p137
        $region82: #{tpu_custom_call.1} parent=71 // pred_check_branch
          %553 = sbr.rel (%p551) target = $region84
        $region83: #{tpu_custom_call.1} parent=71 // pred_region
          %554 = dma.done %s548, 16
        $region84: #{tpu_custom_call.1} parent=71 // pred_fallthru
          _
        %s555 = sand.u32 %s31, 1
        %s556 = scalar_lea.sflag [#allocation4], %s555
        %s557 = sand.u32 %s254, 1
        %s558 = scalar_lea.vmem [#allocation9], %s557
        // Predicated region
        $region85: #{tpu_custom_call.1} parent=71 // pred_check
          %p559 = pneg %p267
        $region86: #{tpu_custom_call.1} parent=71 // pred_check_branch
          %561 = sbr.rel (%p559) target = $region88
        $region87: #{tpu_custom_call.1} parent=71 // pred_region
          %562 = dma.done %s556, 16
        $region88: #{tpu_custom_call.1} parent=71 // pred_fallthru
          _
        %s563 = sand.u32 %s31, 1
        %s564 = scalar_lea.sflag [#allocation4], %s563
        %s565 = sand.u32 %s51, 1
        %s566 = smul.addr %s565, 8
        %s567 = scalar_lea.vmem [#allocation3], %s566
        %p568 = pneg %p64
        %p569 = pneg %p61
        %p570 = pneg %p85
        %p571 = pneg %p82
        %p572 = scmp.lt.s32.totalorder %s36, 1
        %s573 = scalar_select %p572, %s36, 1
        %s574 = scalar_lea.vmem %s2, %s573
        %p575 = pneg %p111
        %p576 = pneg %p108
        %s577 = sand.u32 %s31, 1
        %s578 = scalar_lea.sflag [#allocation4], %s577
        %s579 = sand.u32 %s124, 1
        %s580 = scalar_lea.vmem [#allocation8], %s579
        %p581 = pneg %p137
        %p582 = pneg %p134
        %p583 = scmp.lt.s32.totalorder %s36, 1
        %s584 = scalar_select %p583, %s36, 1
        %s585 = smul.addr %s584, 4
        %s586 = smul.addr %s585, 4
        %s587 = scalar_lea.vmem %s4, %s586
        %p588 = pneg %p163
        %p589 = pneg %p160
        %p590 = scmp.lt.s32.totalorder %s36, 1
        %s591 = scalar_select %p590, %s36, 1
        %s592 = smul.addr %s591, 8
        %s593 = smul.addr %s592, 4
        %s594 = scalar_lea.vmem %s5, %s593
        %p595 = pneg %p189
        %p596 = pneg %p186
        %p597 = scmp.lt.s32.totalorder %s36, 1
        %s598 = scalar_select %p597, %s36, 1
        %s599 = smul.addr %s598, 4
        %s600 = smul.addr %s599, 4
        %s601 = scalar_lea.vmem %s6, %s600
        %p602 = pneg %p215
        %p603 = pneg %p212
        %p604 = scmp.lt.s32.totalorder %s36, 1
        %s605 = scalar_select %p604, %s36, 1
        %s606 = smul.addr %s605, 4
        %s607 = smul.addr %s606, 4
        %s608 = scalar_lea.vmem %s7, %s607
        %p609 = pneg %p241
        %p610 = pneg %p238
        %s611 = sand.u32 %s31, 1
        %s612 = scalar_lea.sflag [#allocation4], %s611
        %s613 = sand.u32 %s254, 1
        %s614 = scalar_lea.vmem [#allocation9], %s613
        %p615 = pneg %p267
        %p616 = pneg %p264
        %p617 = scmp.lt.s32.totalorder %s36, 1
        %s618 = scalar_select %p617, %s36, 1
        %s619 = smul.addr %s618, 4
        %s620 = smul.addr %s619, 4
        %s621 = scalar_lea.vmem %s9, %s620
        %p622 = pneg %p293
        %p623 = pneg %p290
        %p624 = scmp.lt.s32.totalorder %s36, 1
        %s625 = scalar_select %p624, %s36, 1
        %s626 = scalar_lea.vmem %s10, %s625
        %p627 = pneg %p319
        %p628 = pneg %p316
        %p629 = pneg %p340
        %p630 = pneg %p337
        %p631 = pneg %p361
        %p632 = pneg %p358
        %p633 = pneg %p387
        %p634 = pneg %p384
        %s635 = sand.u32 %s374, 1
        %s636 = scalar_lea.sflag [#allocation5], %s635
        %s637 = sand.u32 %s374, 1
        %s638 = smul.addr %s637, 8
        %s639 = scalar_lea.vmem [#allocation10], %s638
        %p640 = scmp.lt.s32.totalorder %s36, 1
        %s641 = scalar_select %p640, %s36, 1
        %s642 = scalar_lea.vmem %s2, %s641
        %p643 = scmp.lt.s32.totalorder %s36, 1
        %s644 = scalar_select %p643, %s36, 1
        %s645 = smul.addr %s644, 4
        %s646 = smul.addr %s645, 4
        %s647 = scalar_lea.vmem %s4, %s646
        %p648 = scmp.lt.s32.totalorder %s36, 1
        %s649 = scalar_select %p648, %s36, 1
        %s650 = smul.addr %s649, 8
        %s651 = smul.addr %s650, 4
        %s652 = scalar_lea.vmem %s5, %s651
        %p653 = scmp.lt.s32.totalorder %s36, 1
        %s654 = scalar_select %p653, %s36, 1
        %s655 = smul.addr %s654, 4
        %s656 = smul.addr %s655, 4
        %s657 = scalar_lea.vmem %s6, %s656
        %p658 = scmp.lt.s32.totalorder %s36, 1
        %s659 = scalar_select %p658, %s36, 1
        %s660 = smul.addr %s659, 4
        %s661 = smul.addr %s660, 4
        %s662 = scalar_lea.vmem %s7, %s661
        %p663 = scmp.lt.s32.totalorder %s36, 1
        %s664 = scalar_select %p663, %s36, 1
        %s665 = smul.addr %s664, 4
        %s666 = smul.addr %s665, 4
        %s667 = scalar_lea.vmem %s9, %s666
        %p668 = scmp.lt.s32.totalorder %s36, 1
        %s669 = scalar_select %p668, %s36, 1
        %s670 = scalar_lea.vmem %s10, %s669
        %p672 = scmp.eq.s32.totalorder %s36, 0
        // Predicated region
        $region89: #{tpu_custom_call.1} parent=71 // pred_check
          %p673 = pneg %p672
        $region90: #{tpu_custom_call.1} parent=71 // pred_check_branch
          %675 = sbr.rel (%p673) target = $region92
        $region91: #{tpu_custom_call.1} parent=71 // pred_region
          %v676 = vld [vmem:[%s538] sm:$0xff]
          %v677 = vmul.f32 %v676, 5.656854
          %v678 = vld [vmem:[#allocation6] sm:$0xff]
          %v679 = vadd.f32 %v677, %v678
          %vm680 = vcmask 261120
          %681 = vst.msk [vmem:[#allocation2] sm:$0xff] %vm680, %v679
        $region92: #{tpu_custom_call.1} parent=71 // pred_fallthru
          _
        %v682 = vld [vmem:[#allocation2] sm:$0xff]
        %v683 = vlaneseq
        %v684 = vshrl.u32 %v683, 7
        %v685 = vlaneseq
        %v686 = vand.u32 %v685, 127
        %vm687 = vcmp.ge.s32.totalorder %v684, %v686
        %v688 = vsel %vm687, 1.0, 0.0
        %v689 = vld [vmem:[%s642] sm:$0x1]
        %v690 = vld [vmem:[%s550] sm:$0x1]
        %vm691 = vcmask 261120
        %v692 = vsel %vm691, %v682, 0.0
        %693 = vadd.xlane.f32.xlu0 %v692
        %v694 = vpop.xlane.xlu0 %693
        %v695 = vrcp.pop 32.0
        %v696 = vmul.f32 %v694, %v695
        %v697 = vsub.f32 %v682, %v696
        %v698 = vmul.f32 %v697, %v697
        %v699 = vsel %vm691, %v698, 0.0
        %700 = vadd.xlane.f32.xlu0 %v699
        %v701 = vpop.xlane.xlu0 %700
        %v702 = vmul.f32 %v701, %v695
        %v703 = vadd.f32 %v702, 1e-05
        %v704 = vrsqrt.pop %v703
        %v705 = vmul.f32 %v697, %v704
        %v707 = vlaneseq
        %v708 = vshrl.u32 %v707, 7
        %v709 = vsub.s32 0, %v708
        %v710 = vrot.slane %v689, %v709
        %v712 = vmul.f32 %v705, %v710
        %v714 = vlaneseq
        %v715 = vshrl.u32 %v714, 7
        %v716 = vsub.s32 0, %v715
        %v717 = vrot.slane %v690, %v716
        %v719 = vadd.f32 %v712, %v717
        %v720 = vld [vmem:[%s647] sm:$0xf]
        %v721 = vld [vmem:[%s647 + $0x4] sm:$0xf]
        %v722 = vld [vmem:[%s647 + $0x8] sm:$0xf]
        %v723 = vld [vmem:[%s647 + $0xc] sm:$0xf]
        %v724 = vpack.c.bf16 %v719, %v719
        %v729 = vunpack.c.l.b16 %v720
        %v730 = vunpack.c.l.b16 %v721
        %v731 = vunpack.c.l.b16 %v722
        %v732 = vunpack.c.l.b16 %v723
        %v733 = vpack.c.b16 %v730, %v729
        %v734 = vpack.c.b16 %v732, %v731
        %v736 = vsel %vm691, %v724, 0
        %v739 = vsel %vm691, %v733, 0
        %v742 = vsel %vm691, %v734, 0
        %744 = vmatprep.subr.bf16.mxu0 0
        %745 = vmatpush1.bf16.xpose.msra.mxu0 %v739
        %746 = vmatprep.subr.bf16.mxu0 0
        %747 = vmatpush1.bf16.xpose.msra.mxu0 %v742
        %748 = vmatprep.subr.bf16.mxu0 0
        %749 = vmatpush1.bf16.xpose.msra.mxu0 0
        %750 = vmatprep.subr.bf16.mxu0 0
        %751 = vmatpush1.bf16.xpose.msra.mxu0 0
        %752 = vmatprep.subr.bf16.mxu0 0
        %753 = vmatpush1.bf16.xpose.msra.mxu0 0
        %754 = vmatprep.subr.bf16.mxu0 0
        %755 = vmatpush1.bf16.xpose.msra.mxu0 0
        %756 = vmatprep.subr.bf16.mxu0 0
        %757 = vmatpush1.bf16.xpose.msra.mxu0 0
        %758 = vmatprep.subr.bf16.mxu0 0
        %759 = vmatpush1.bf16.xpose.msra.mxu0 0
        %760 = vmatprep.subr.bf16.mxu0 0
        %761 = vmatpush1.bf16.xpose.msra.mxu0 0
        %762 = vmatprep.subr.bf16.mxu0 0
        %763 = vmatpush1.bf16.xpose.msra.mxu0 0
        %764 = vmatprep.subr.bf16.mxu0 0
        %765 = vmatpush1.bf16.xpose.msra.mxu0 0
        %766 = vmatprep.subr.bf16.mxu0 0
        %767 = vmatpush1.bf16.xpose.msra.mxu0 0
        %768 = vmatprep.subr.bf16.mxu0 0
        %769 = vmatpush1.bf16.xpose.msra.mxu0 0
        %770 = vmatprep.subr.bf16.mxu0 0
        %771 = vmatpush1.bf16.xpose.msra.mxu0 0
        %772 = vmatprep.subr.bf16.mxu0 0
        %773 = vmatpush1.bf16.xpose.msra.mxu0 0
        %774 = vmatprep.subr.bf16.mxu0 0
        %775 = vmatpush1.bf16.xpose.msra.mxu0 0
        %776 = vmatprep.mubr.bf16.mxu0 0
        %777 = vmatmul.mubr.bf16.gmra.mrb[0].mxu0 %v736
        %v778 = vpop.f32.mrb[0].mxu0
        %v779 = vadd.f32 0.0, %v778
        %v780 = vpop.f32.mrb[0].mxu0
        %v781 = vpop.f32.mrb[0].mxu0
        %v782 = vpop.f32.mrb[0].mxu0
        %783 = vdwg.mxu0
        %v784 = vld [vmem:[%s652] sm:$0xf]
        %v785 = vld [vmem:[%s652 + $0x4] sm:$0xf]
        %v786 = vld [vmem:[%s652 + $0x8] sm:$0xf]
        %v787 = vld [vmem:[%s652 + $0xc] sm:$0xf]
        %v788 = vld [vmem:[%s652 + $0x10] sm:$0xf]
        %v789 = vld [vmem:[%s652 + $0x14] sm:$0xf]
        %v790 = vld [vmem:[%s652 + $0x18] sm:$0xf]
        %v791 = vld [vmem:[%s652 + $0x1c] sm:$0xf]
        %v792 = vpack.c.bf16 %v682, %v682
        %v801 = vunpack.c.l.b16 %v784
        %v802 = vunpack.c.l.b16 %v785
        %v803 = vunpack.c.l.b16 %v786
        %v804 = vunpack.c.l.b16 %v787
        %v805 = vunpack.c.l.b16 %v788
        %v806 = vunpack.c.l.b16 %v789
        %v807 = vunpack.c.l.b16 %v790
        %v808 = vunpack.c.l.b16 %v791
        %v809 = vpack.c.b16 %v802, %v801
        %v810 = vpack.c.b16 %v804, %v803
        %v811 = vpack.c.b16 %v806, %v805
        %v812 = vpack.c.b16 %v808, %v807
        %v814 = vsel %vm691, %v792, 0
        %v817 = vsel %vm691, %v809, 0
        %v820 = vsel %vm691, %v810, 0
        %v823 = vsel %vm691, %v811, 0
        %v826 = vsel %vm691, %v812, 0
        %828 = vmatprep.subr.bf16.mxu0 0
        %829 = vmatpush1.bf16.xpose.msra.mxu0 %v817
        %830 = vmatprep.subr.bf16.mxu0 0
        %831 = vmatpush1.bf16.xpose.msra.mxu0 %v820
        %832 = vmatprep.subr.bf16.mxu0 0
        %833 = vmatpush1.bf16.xpose.msra.mxu0 %v823
        %834 = vmatprep.subr.bf16.mxu0 0
        %835 = vmatpush1.bf16.xpose.msra.mxu0 %v826
        %836 = vmatprep.subr.bf16.mxu0 0
        %837 = vmatpush1.bf16.xpose.msra.mxu0 0
        %838 = vmatprep.subr.bf16.mxu0 0
        %839 = vmatpush1.bf16.xpose.msra.mxu0 0
        %840 = vmatprep.subr.bf16.mxu0 0
        %841 = vmatpush1.bf16.xpose.msra.mxu0 0
        %842 = vmatprep.subr.bf16.mxu0 0
        %843 = vmatpush1.bf16.xpose.msra.mxu0 0
        %844 = vmatprep.subr.bf16.mxu0 0
        %845 = vmatpush1.bf16.xpose.msra.mxu0 0
        %846 = vmatprep.subr.bf16.mxu0 0
        %847 = vmatpush1.bf16.xpose.msra.mxu0 0
        %848 = vmatprep.subr.bf16.mxu0 0
        %849 = vmatpush1.bf16.xpose.msra.mxu0 0
        %850 = vmatprep.subr.bf16.mxu0 0
        %851 = vmatpush1.bf16.xpose.msra.mxu0 0
        %852 = vmatprep.subr.bf16.mxu0 0
        %853 = vmatpush1.bf16.xpose.msra.mxu0 0
        %854 = vmatprep.subr.bf16.mxu0 0
        %855 = vmatpush1.bf16.xpose.msra.mxu0 0
        %856 = vmatprep.subr.bf16.mxu0 0
        %857 = vmatpush1.bf16.xpose.msra.mxu0 0
        %858 = vmatprep.subr.bf16.mxu0 0
        %859 = vmatpush1.bf16.xpose.msra.mxu0 0
        %860 = vmatprep.mubr.bf16.mxu0 0
        %861 = vmatmul.mubr.bf16.gmra.mrb[0].mxu0 %v814
        %v862 = vpop.f32.mrb[0].mxu0
        %v863 = vadd.f32 0.0, %v862
        %v864 = vpop.f32.mrb[0].mxu0
        %v865 = vpop.f32.mrb[0].mxu0
        %v866 = vpop.f32.mrb[0].mxu0
        %867 = vdwg.mxu0
        %869 = vrot.lane.b32.xlu0 %v779, 120
        %v870 = vpop.permute.xlu0 %869
        %872 = vrot.lane.b32.xlu0 %v779, 112
        %v873 = vpop.permute.xlu0 %872
        %875 = vrot.lane.b32.xlu0 %v779, 104
        %v876 = vpop.permute.xlu0 %875
        %v878 = vpack.c.bf16 %v779, %v779
        %v879 = vpack.c.bf16 %v870, %v870
        %v880 = vpack.c.bf16 %v873, %v873
        %v881 = vpack.c.bf16 %v876, %v876
        %883 = vrot.lane.b32.xlu0 %v863, 120
        %v884 = vpop.permute.xlu0 %883
        %886 = vrot.lane.b32.xlu0 %v863, 112
        %v887 = vpop.permute.xlu0 %886
        %889 = vrot.lane.b32.xlu0 %v863, 104
        %v890 = vpop.permute.xlu0 %889
        %v892 = vpack.c.bf16 %v863, %v863
        %v893 = vpack.c.bf16 %v884, %v884
        %v894 = vpack.c.bf16 %v887, %v887
        %v895 = vpack.c.bf16 %v890, %v890
        %vm896 = vcmask 64512
        %v898 = vsel %vm896, %v878, 0
        %v901 = vsel %vm896, %v892, 0
        %903 = vmatprep.subr.bf16.mxu0 0
        %904 = vmatpush1.bf16.xpose.msra.mxu0 %v901
        %905 = vmatprep.subr.bf16.mxu0 0
        %906 = vmatpush1.bf16.xpose.msra.mxu0 0
        %907 = vmatprep.subr.bf16.mxu0 0
        %908 = vmatpush1.bf16.xpose.msra.mxu0 0
        %909 = vmatprep.subr.bf16.mxu0 0
        %910 = vmatpush1.bf16.xpose.msra.mxu0 0
        %911 = vmatprep.subr.bf16.mxu0 0
        %912 = vmatpush1.bf16.xpose.msra.mxu0 0
        %913 = vmatprep.subr.bf16.mxu0 0
        %914 = vmatpush1.bf16.xpose.msra.mxu0 0
        %915 = vmatprep.subr.bf16.mxu0 0
        %916 = vmatpush1.bf16.xpose.msra.mxu0 0
        %917 = vmatprep.subr.bf16.mxu0 0
        %918 = vmatpush1.bf16.xpose.msra.mxu0 0
        %919 = vmatprep.subr.bf16.mxu0 0
        %920 = vmatpush1.bf16.xpose.msra.mxu0 0
        %921 = vmatprep.subr.bf16.mxu0 0
        %922 = vmatpush1.bf16.xpose.msra.mxu0 0
        %923 = vmatprep.subr.bf16.mxu0 0
        %924 = vmatpush1.bf16.xpose.msra.mxu0 0
        %925 = vmatprep.subr.bf16.mxu0 0
        %926 = vmatpush1.bf16.xpose.msra.mxu0 0
        %927 = vmatprep.subr.bf16.mxu0 0
        %928 = vmatpush1.bf16.xpose.msra.mxu0 0
        %929 = vmatprep.subr.bf16.mxu0 0
        %930 = vmatpush1.bf16.xpose.msra.mxu0 0
        %931 = vmatprep.subr.bf16.mxu0 0
        %932 = vmatpush1.bf16.xpose.msra.mxu0 0
        %933 = vmatprep.subr.bf16.mxu0 0
        %934 = vmatpush1.bf16.xpose.msra.mxu0 0
        %935 = vmatprep.mubr.bf16.mxu0 0
        %936 = vmatmul.mubr.bf16.gmra.mrb[0].mxu0 %v898
        %v937 = vpop.f32.mrb[0].mxu0
        %v938 = vadd.f32 %v688, %v937
        %v939 = vpop.f32.mrb[0].mxu0
        %v940 = vpop.f32.mrb[0].mxu0
        %v941 = vpop.f32.mrb[0].mxu0
        %942 = vdwg.mxu0
        %v944 = vsel %vm896, %v879, 0
        %v947 = vsel %vm896, %v893, 0
        %949 = vmatprep.subr.bf16.mxu0 0
        %950 = vmatpush1.bf16.xpose.msra.mxu0 %v947
        %951 = vmatprep.subr.bf16.mxu0 0
        %952 = vmatpush1.bf16.xpose.msra.mxu0 0
        %953 = vmatprep.subr.bf16.mxu0 0
        %954 = vmatpush1.bf16.xpose.msra.mxu0 0
        %955 = vmatprep.subr.bf16.mxu0 0
        %956 = vmatpush1.bf16.xpose.msra.mxu0 0
        %957 = vmatprep.subr.bf16.mxu0 0
        %958 = vmatpush1.bf16.xpose.msra.mxu0 0
        %959 = vmatprep.subr.bf16.mxu0 0
        %960 = vmatpush1.bf16.xpose.msra.mxu0 0
        %961 = vmatprep.subr.bf16.mxu0 0
        %962 = vmatpush1.bf16.xpose.msra.mxu0 0
        %963 = vmatprep.subr.bf16.mxu0 0
        %964 = vmatpush1.bf16.xpose.msra.mxu0 0
        %965 = vmatprep.subr.bf16.mxu0 0
        %966 = vmatpush1.bf16.xpose.msra.mxu0 0
        %967 = vmatprep.subr.bf16.mxu0 0
        %968 = vmatpush1.bf16.xpose.msra.mxu0 0
        %969 = vmatprep.subr.bf16.mxu0 0
        %970 = vmatpush1.bf16.xpose.msra.mxu0 0
        %971 = vmatprep.subr.bf16.mxu0 0
        %972 = vmatpush1.bf16.xpose.msra.mxu0 0
        %973 = vmatprep.subr.bf16.mxu0 0
        %974 = vmatpush1.bf16.xpose.msra.mxu0 0
        %975 = vmatprep.subr.bf16.mxu0 0
        %976 = vmatpush1.bf16.xpose.msra.mxu0 0
        %977 = vmatprep.subr.bf16.mxu0 0
        %978 = vmatpush1.bf16.xpose.msra.mxu0 0
        %979 = vmatprep.subr.bf16.mxu0 0
        %980 = vmatpush1.bf16.xpose.msra.mxu0 0
        %981 = vmatprep.mubr.bf16.mxu0 0
        %982 = vmatmul.mubr.bf16.gmra.mrb[0].mxu0 %v944
        %v983 = vpop.f32.mrb[0].mxu0
        %v984 = vadd.f32 %v688, %v983
        %v985 = vpop.f32.mrb[0].mxu0
        %v986 = vpop.f32.mrb[0].mxu0
        %v987 = vpop.f32.mrb[0].mxu0
        %988 = vdwg.mxu0
        %v990 = vsel %vm896, %v880, 0
        %v993 = vsel %vm896, %v894, 0
        %995 = vmatprep.subr.bf16.mxu0 0
        %996 = vmatpush1.bf16.xpose.msra.mxu0 %v993
        %997 = vmatprep.subr.bf16.mxu0 0
        %998 = vmatpush1.bf16.xpose.msra.mxu0 0
        %999 = vmatprep.subr.bf16.mxu0 0
        %1000 = vmatpush1.bf16.xpose.msra.mxu0 0
        %1001 = vmatprep.subr.bf16.mxu0 0
        %1002 = vmatpush1.bf16.xpose.msra.mxu0 0
        %1003 = vmatprep.subr.bf16.mxu0 0
        %1004 = vmatpush1.bf16.xpose.msra.mxu0 0
        %1005 = vmatprep.subr.bf16.mxu0 0
        %1006 = vmatpush1.bf16.xpose.msra.mxu0 0
        %1007 = vmatprep.subr.bf16.mxu0 0
        %1008 = vmatpush1.bf16.xpose.msra.mxu0 0
        %1009 = vmatprep.subr.bf16.mxu0 0
        %1010 = vmatpush1.bf16.xpose.msra.mxu0 0
        %1011 = vmatprep.subr.bf16.mxu0 0
        %1012 = vmatpush1.bf16.xpose.msra.mxu0 0
        %1013 = vmatprep.subr.bf16.mxu0 0
        %1014 = vmatpush1.bf16.xpose.msra.mxu0 0
        %1015 = vmatprep.subr.bf16.mxu0 0
        %1016 = vmatpush1.bf16.xpose.msra.mxu0 0
        %1017 = vmatprep.subr.bf16.mxu0 0
        %1018 = vmatpush1.bf16.xpose.msra.mxu0 0
        %1019 = vmatprep.subr.bf16.mxu0 0
        %1020 = vmatpush1.bf16.xpose.msra.mxu0 0
        %1021 = vmatprep.subr.bf16.mxu0 0
        %1022 = vmatpush1.bf16.xpose.msra.mxu0 0
        %1023 = vmatprep.subr.bf16.mxu0 0
        %1024 = vmatpush1.bf16.xpose.msra.mxu0 0
        %1025 = vmatprep.subr.bf16.mxu0 0
        %1026 = vmatpush1.bf16.xpose.msra.mxu0 0
        %1027 = vmatprep.mubr.bf16.mxu0 0
        %1028 = vmatmul.mubr.bf16.gmra.mrb[0].mxu0 %v990
        %v1029 = vpop.f32.mrb[0].mxu0
        %v1030 = vadd.f32 %v688, %v1029
        %v1031 = vpop.f32.mrb[0].mxu0
        %v1032 = vpop.f32.mrb[0].mxu0
        %v1033 = vpop.f32.mrb[0].mxu0
        %1034 = vdwg.mxu0
        %v1036 = vsel %vm896, %v881, 0
        %v1039 = vsel %vm896, %v895, 0
        %1041 = vmatprep.subr.bf16.mxu0 0
        %1042 = vmatpush1.bf16.xpose.msra.mxu0 %v1039
        %1043 = vmatprep.subr.bf16.mxu0 0
        %1044 = vmatpush1.bf16.xpose.msra.mxu0 0
        %1045 = vmatprep.subr.bf16.mxu0 0
        %1046 = vmatpush1.bf16.xpose.msra.mxu0 0
        %1047 = vmatprep.subr.bf16.mxu0 0
        %1048 = vmatpush1.bf16.xpose.msra.mxu0 0
        %1049 = vmatprep.subr.bf16.mxu0 0
        %1050 = vmatpush1.bf16.xpose.msra.mxu0 0
        %1051 = vmatprep.subr.bf16.mxu0 0
        %1052 = vmatpush1.bf16.xpose.msra.mxu0 0
        %1053 = vmatprep.subr.bf16.mxu0 0
        %1054 = vmatpush1.bf16.xpose.msra.mxu0 0
        %1055 = vmatprep.subr.bf16.mxu0 0
        %1056 = vmatpush1.bf16.xpose.msra.mxu0 0
        %1057 = vmatprep.subr.bf16.mxu0 0
        %1058 = vmatpush1.bf16.xpose.msra.mxu0 0
        %1059 = vmatprep.subr.bf16.mxu0 0
        %1060 = vmatpush1.bf16.xpose.msra.mxu0 0
        %1061 = vmatprep.subr.bf16.mxu0 0
        %1062 = vmatpush1.bf16.xpose.msra.mxu0 0
        %1063 = vmatprep.subr.bf16.mxu0 0
        %1064 = vmatpush1.bf16.xpose.msra.mxu0 0
        %1065 = vmatprep.subr.bf16.mxu0 0
        %1066 = vmatpush1.bf16.xpose.msra.mxu0 0
        %1067 = vmatprep.subr.bf16.mxu0 0
        %1068 = vmatpush1.bf16.xpose.msra.mxu0 0
        %1069 = vmatprep.subr.bf16.mxu0 0
        %1070 = vmatpush1.bf16.xpose.msra.mxu0 0
        %1071 = vmatprep.subr.bf16.mxu0 0
        %1072 = vmatpush1.bf16.xpose.msra.mxu0 0
        %1073 = vmatprep.mubr.bf16.mxu0 0
        %1074 = vmatmul.mubr.bf16.gmra.mrb[0].mxu0 %v1036
        %v1075 = vpop.f32.mrb[0].mxu0
        %v1076 = vadd.f32 %v688, %v1075
        %v1077 = vpop.f32.mrb[0].mxu0
        %v1078 = vpop.f32.mrb[0].mxu0
        %v1079 = vpop.f32.mrb[0].mxu0
        %1080 = vdwg.mxu0
        %v1081 = vsel %vm896, %v938, -inf
        %1082 = vmax.xlane.f32.xlu0 %v1081
        %v1083 = vpop.xlane.xlu0 %1082
        %v1084 = vsel %vm896, %v984, -inf
        %1085 = vmax.xlane.f32.xlu0 %v1084
        %v1086 = vpop.xlane.xlu0 %1085
        %v1087 = vsel %vm896, %v1030, -inf
        %1088 = vmax.xlane.f32.xlu0 %v1087
        %v1089 = vpop.xlane.xlu0 %1088
        %v1090 = vsel %vm896, %v1076, -inf
        %1091 = vmax.xlane.f32.xlu0 %v1090
        %v1092 = vpop.xlane.xlu0 %1091
        %v1093 = vsub.f32 %v938, %v1083
        %v1094 = vsub.f32 %v984, %v1086
        %v1095 = vsub.f32 %v1030, %v1089
        %v1096 = vsub.f32 %v1076, %v1092
        %v1097 = vmul.f32 %v1093, 1.442695
        %v1098 = vpow.pop %v1097
        %v1099 = vmul.f32 %v1094, 1.442695
        %v1100 = vpow.pop %v1099
        %v1101 = vmul.f32 %v1095, 1.442695
        %v1102 = vpow.pop %v1101
        %v1103 = vmul.f32 %v1096, 1.442695
        %v1104 = vpow.pop %v1103
        %v1105 = vsel %vm896, %v1098, 0.0
        %1106 = vadd.xlane.f32.xlu0 %v1105
        %v1107 = vpop.xlane.xlu0 %1106
        %v1108 = vsel %vm896, %v1100, 0.0
        %1109 = vadd.xlane.f32.xlu0 %v1108
        %v1110 = vpop.xlane.xlu0 %1109
        %v1111 = vsel %vm896, %v1102, 0.0
        %1112 = vadd.xlane.f32.xlu0 %v1111
        %v1113 = vpop.xlane.xlu0 %1112
        %v1114 = vsel %vm896, %v1104, 0.0
        %1115 = vadd.xlane.f32.xlu0 %v1114
        %v1116 = vpop.xlane.xlu0 %1115
        %v1117 = vpack.c.bf16 %v1098, %v1098
        %v1118 = vpack.c.bf16 %v1100, %v1100
        %v1119 = vpack.c.bf16 %v1102, %v1102
        %v1120 = vpack.c.bf16 %v1104, %v1104
        %1122 = vrot.lane.b32.xlu0 %v892, 96
        %v1123 = vpop.permute.xlu0 %1122
        %v1125 = vsel %vm896, %v1117, 0
        %vm1127 = vcmask 1043456
        %v1129 = vsel %vm1127, %v1123, 0
        %1131 = vmatprep.subr.bf16.mxu0 0
        %1132 = vmatpush1.bf16.msra.mxu0 %v1129
        %1133 = vmatprep.subr.bf16.mxu0 0
        %1134 = vmatpush1.bf16.msra.mxu0 0
        %1135 = vmatprep.subr.bf16.mxu0 0
        %1136 = vmatpush1.bf16.msra.mxu0 0
        %1137 = vmatprep.subr.bf16.mxu0 0
        %1138 = vmatpush1.bf16.msra.mxu0 0
        %1139 = vmatprep.subr.bf16.mxu0 0
        %1140 = vmatpush1.bf16.msra.mxu0 0
        %1141 = vmatprep.subr.bf16.mxu0 0
        %1142 = vmatpush1.bf16.msra.mxu0 0
        %1143 = vmatprep.subr.bf16.mxu0 0
        %1144 = vmatpush1.bf16.msra.mxu0 0
        %1145 = vmatprep.subr.bf16.mxu0 0
        %1146 = vmatpush1.bf16.msra.mxu0 0
        %1147 = vmatprep.subr.bf16.mxu0 0
        %1148 = vmatpush1.bf16.msra.mxu0 0
        %1149 = vmatprep.subr.bf16.mxu0 0
        %1150 = vmatpush1.bf16.msra.mxu0 0
        %1151 = vmatprep.subr.bf16.mxu0 0
        %1152 = vmatpush1.bf16.msra.mxu0 0
        %1153 = vmatprep.subr.bf16.mxu0 0
        %1154 = vmatpush1.bf16.msra.mxu0 0
        %1155 = vmatprep.subr.bf16.mxu0 0
        %1156 = vmatpush1.bf16.msra.mxu0 0
        %1157 = vmatprep.subr.bf16.mxu0 0
        %1158 = vmatpush1.bf16.msra.mxu0 0
        %1159 = vmatprep.subr.bf16.mxu0 0
        %1160 = vmatpush1.bf16.msra.mxu0 0
        %1161 = vmatprep.subr.bf16.mxu0 0
        %1162 = vmatpush1.bf16.msra.mxu0 0
        %1163 = vmatprep.mubr.bf16.mxu0 0
        %1164 = vmatmul.mubr.bf16.gmra.mrb[0].mxu0 %v1125
        %v1165 = vpop.f32.mrb[0].mxu0
        %v1166 = vadd.f32 0.0, %v1165
        %v1167 = vpop.f32.mrb[0].mxu0
        %v1168 = vpop.f32.mrb[0].mxu0
        %v1169 = vpop.f32.mrb[0].mxu0
        %1170 = vdwg.mxu0
        %1172 = vrot.lane.b32.xlu0 %v893, 96
        %v1173 = vpop.permute.xlu0 %1172
        %v1175 = vsel %vm896, %v1118, 0
        %v1178 = vsel %vm1127, %v1173, 0
        %1180 = vmatprep.subr.bf16.mxu0 0
        %1181 = vmatpush1.bf16.msra.mxu0 %v1178
        %1182 = vmatprep.subr.bf16.mxu0 0
        %1183 = vmatpush1.bf16.msra.mxu0 0
        %1184 = vmatprep.subr.bf16.mxu0 0
        %1185 = vmatpush1.bf16.msra.mxu0 0
        %1186 = vmatprep.subr.bf16.mxu0 0
        %1187 = vmatpush1.bf16.msra.mxu0 0
        %1188 = vmatprep.subr.bf16.mxu0 0
        %1189 = vmatpush1.bf16.msra.mxu0 0
        %1190 = vmatprep.subr.bf16.mxu0 0
        %1191 = vmatpush1.bf16.msra.mxu0 0
        %1192 = vmatprep.subr.bf16.mxu0 0
        %1193 = vmatpush1.bf16.msra.mxu0 0
        %1194 = vmatprep.subr.bf16.mxu0 0
        %1195 = vmatpush1.bf16.msra.mxu0 0
        %1196 = vmatprep.subr.bf16.mxu0 0
        %1197 = vmatpush1.bf16.msra.mxu0 0
        %1198 = vmatprep.subr.bf16.mxu0 0
        %1199 = vmatpush1.bf16.msra.mxu0 0
        %1200 = vmatprep.subr.bf16.mxu0 0
        %1201 = vmatpush1.bf16.msra.mxu0 0
        %1202 = vmatprep.subr.bf16.mxu0 0
        %1203 = vmatpush1.bf16.msra.mxu0 0
        %1204 = vmatprep.subr.bf16.mxu0 0
        %1205 = vmatpush1.bf16.msra.mxu0 0
        %1206 = vmatprep.subr.bf16.mxu0 0
        %1207 = vmatpush1.bf16.msra.mxu0 0
        %1208 = vmatprep.subr.bf16.mxu0 0
        %1209 = vmatpush1.bf16.msra.mxu0 0
        %1210 = vmatprep.subr.bf16.mxu0 0
        %1211 = vmatpush1.bf16.msra.mxu0 0
        %1212 = vmatprep.mubr.bf16.mxu0 0
        %1213 = vmatmul.mubr.bf16.gmra.mrb[0].mxu0 %v1175
        %v1214 = vpop.f32.mrb[0].mxu0
        %v1215 = vadd.f32 0.0, %v1214
        %v1216 = vpop.f32.mrb[0].mxu0
        %v1217 = vpop.f32.mrb[0].mxu0
        %v1218 = vpop.f32.mrb[0].mxu0
        %1219 = vdwg.mxu0
        %1221 = vrot.lane.b32.xlu0 %v894, 96
        %v1222 = vpop.permute.xlu0 %1221
        %v1224 = vsel %vm896, %v1119, 0
        %v1227 = vsel %vm1127, %v1222, 0
        %1229 = vmatprep.subr.bf16.mxu0 0
        %1230 = vmatpush1.bf16.msra.mxu0 %v1227
        %1231 = vmatprep.subr.bf16.mxu0 0
        %1232 = vmatpush1.bf16.msra.mxu0 0
        %1233 = vmatprep.subr.bf16.mxu0 0
        %1234 = vmatpush1.bf16.msra.mxu0 0
        %1235 = vmatprep.subr.bf16.mxu0 0
        %1236 = vmatpush1.bf16.msra.mxu0 0
        %1237 = vmatprep.subr.bf16.mxu0 0
        %1238 = vmatpush1.bf16.msra.mxu0 0
        %1239 = vmatprep.subr.bf16.mxu0 0
        %1240 = vmatpush1.bf16.msra.mxu0 0
        %1241 = vmatprep.subr.bf16.mxu0 0
        %1242 = vmatpush1.bf16.msra.mxu0 0
        %1243 = vmatprep.subr.bf16.mxu0 0
        %1244 = vmatpush1.bf16.msra.mxu0 0
        %1245 = vmatprep.subr.bf16.mxu0 0
        %1246 = vmatpush1.bf16.msra.mxu0 0
        %1247 = vmatprep.subr.bf16.mxu0 0
        %1248 = vmatpush1.bf16.msra.mxu0 0
        %1249 = vmatprep.subr.bf16.mxu0 0
        %1250 = vmatpush1.bf16.msra.mxu0 0
        %1251 = vmatprep.subr.bf16.mxu0 0
        %1252 = vmatpush1.bf16.msra.mxu0 0
        %1253 = vmatprep.subr.bf16.mxu0 0
        %1254 = vmatpush1.bf16.msra.mxu0 0
        %1255 = vmatprep.subr.bf16.mxu0 0
        %1256 = vmatpush1.bf16.msra.mxu0 0
        %1257 = vmatprep.subr.bf16.mxu0 0
        %1258 = vmatpush1.bf16.msra.mxu0 0
        %1259 = vmatprep.subr.bf16.mxu0 0
        %1260 = vmatpush1.bf16.msra.mxu0 0
        %1261 = vmatprep.mubr.bf16.mxu0 0
        %1262 = vmatmul.mubr.bf16.gmra.mrb[0].mxu0 %v1224
        %v1263 = vpop.f32.mrb[0].mxu0
        %v1264 = vadd.f32 0.0, %v1263
        %v1265 = vpop.f32.mrb[0].mxu0
        %v1266 = vpop.f32.mrb[0].mxu0
        %v1267 = vpop.f32.mrb[0].mxu0
        %1268 = vdwg.mxu0
        %1270 = vrot.lane.b32.xlu0 %v895, 96
        %v1271 = vpop.permute.xlu0 %1270
        %v1273 = vsel %vm896, %v1120, 0
        %v1276 = vsel %vm1127, %v1271, 0
        %1278 = vmatprep.subr.bf16.mxu0 0
        %1279 = vmatpush1.bf16.msra.mxu0 %v1276
        %1280 = vmatprep.subr.bf16.mxu0 0
        %1281 = vmatpush1.bf16.msra.mxu0 0
        %1282 = vmatprep.subr.bf16.mxu0 0
        %1283 = vmatpush1.bf16.msra.mxu0 0
        %1284 = vmatprep.subr.bf16.mxu0 0
        %1285 = vmatpush1.bf16.msra.mxu0 0
        %1286 = vmatprep.subr.bf16.mxu0 0
        %1287 = vmatpush1.bf16.msra.mxu0 0
        %1288 = vmatprep.subr.bf16.mxu0 0
        %1289 = vmatpush1.bf16.msra.mxu0 0
        %1290 = vmatprep.subr.bf16.mxu0 0
        %1291 = vmatpush1.bf16.msra.mxu0 0
        %1292 = vmatprep.subr.bf16.mxu0 0
        %1293 = vmatpush1.bf16.msra.mxu0 0
        %1294 = vmatprep.subr.bf16.mxu0 0
        %1295 = vmatpush1.bf16.msra.mxu0 0
        %1296 = vmatprep.subr.bf16.mxu0 0
        %1297 = vmatpush1.bf16.msra.mxu0 0
        %1298 = vmatprep.subr.bf16.mxu0 0
        %1299 = vmatpush1.bf16.msra.mxu0 0
        %1300 = vmatprep.subr.bf16.mxu0 0
        %1301 = vmatpush1.bf16.msra.mxu0 0
        %1302 = vmatprep.subr.bf16.mxu0 0
        %1303 = vmatpush1.bf16.msra.mxu0 0
        %1304 = vmatprep.subr.bf16.mxu0 0
        %1305 = vmatpush1.bf16.msra.mxu0 0
        %1306 = vmatprep.subr.bf16.mxu0 0
        %1307 = vmatpush1.bf16.msra.mxu0 0
        %1308 = vmatprep.subr.bf16.mxu0 0
        %1309 = vmatpush1.bf16.msra.mxu0 0
        %1310 = vmatprep.mubr.bf16.mxu0 0
        %1311 = vmatmul.mubr.bf16.gmra.mrb[0].mxu0 %v1273
        %v1312 = vpop.f32.mrb[0].mxu0
        %v1313 = vadd.f32 0.0, %v1312
        %v1314 = vpop.f32.mrb[0].mxu0
        %v1315 = vpop.f32.mrb[0].mxu0
        %v1316 = vpop.f32.mrb[0].mxu0
        %1317 = vdwg.mxu0
        %v1318 = vrcp.pop %v1107
        %v1319 = vrcp.pop %v1110
        %v1320 = vrcp.pop %v1113
        %v1321 = vrcp.pop %v1116
        %v1322 = vmul.f32 %v1166, %v1318
        %v1323 = vmul.f32 %v1215, %v1319
        %v1324 = vmul.f32 %v1264, %v1320
        %v1325 = vmul.f32 %v1313, %v1321
        %1327 = vrot.lane.b32.xlu0 %v1323, 8
        %v1328 = vpop.permute.xlu0 %1327
        %1331 = vrot.lane.b32.xlu0 %v1324, 16
        %v1332 = vpop.permute.xlu0 %1331
        %1335 = vrot.lane.b32.xlu0 %v1325, 24
        %v1336 = vpop.permute.xlu0 %1335
        %v1338 = vsel %vm896, %v1322, %v1328
        %vm1339 = vcmask 130048
        %v1340 = vsel %vm1339, %v1338, %v1332
        %vm1341 = vcmask 195584
        %v1342 = vsel %vm1341, %v1340, %v1336
        %v1343 = vld [vmem:[%s657] sm:$0xf]
        %v1344 = vld [vmem:[%s657 + $0x4] sm:$0xf]
        %v1345 = vld [vmem:[%s657 + $0x8] sm:$0xf]
        %v1346 = vld [vmem:[%s657 + $0xc] sm:$0xf]
        %v1347 = vpack.c.bf16 %v1342, %v1342
        %v1352 = vunpack.c.l.b16 %v1343
        %v1353 = vunpack.c.l.b16 %v1344
        %v1354 = vunpack.c.l.b16 %v1345
        %v1355 = vunpack.c.l.b16 %v1346
        %v1356 = vpack.c.b16 %v1353, %v1352
        %v1357 = vpack.c.b16 %v1355, %v1354
        %v1359 = vsel %vm691, %v1347, 0
        %v1362 = vsel %vm691, %v1356, 0
        %v1365 = vsel %vm691, %v1357, 0
        %1367 = vmatprep.subr.bf16.mxu0 0
        %1368 = vmatpush1.bf16.xpose.msra.mxu0 %v1362
        %1369 = vmatprep.subr.bf16.mxu0 0
        %1370 = vmatpush1.bf16.xpose.msra.mxu0 %v1365
        %1371 = vmatprep.subr.bf16.mxu0 0
        %1372 = vmatpush1.bf16.xpose.msra.mxu0 0
        %1373 = vmatprep.subr.bf16.mxu0 0
        %1374 = vmatpush1.bf16.xpose.msra.mxu0 0
        %1375 = vmatprep.subr.bf16.mxu0 0
        %1376 = vmatpush1.bf16.xpose.msra.mxu0 0
        %1377 = vmatprep.subr.bf16.mxu0 0
        %1378 = vmatpush1.bf16.xpose.msra.mxu0 0
        %1379 = vmatprep.subr.bf16.mxu0 0
        %1380 = vmatpush1.bf16.xpose.msra.mxu0 0
        %1381 = vmatprep.subr.bf16.mxu0 0
        %1382 = vmatpush1.bf16.xpose.msra.mxu0 0
        %1383 = vmatprep.subr.bf16.mxu0 0
        %1384 = vmatpush1.bf16.xpose.msra.mxu0 0
        %1385 = vmatprep.subr.bf16.mxu0 0
        %1386 = vmatpush1.bf16.xpose.msra.mxu0 0
        %1387 = vmatprep.subr.bf16.mxu0 0
        %1388 = vmatpush1.bf16.xpose.msra.mxu0 0
        %1389 = vmatprep.subr.bf16.mxu0 0
        %1390 = vmatpush1.bf16.xpose.msra.mxu0 0
        %1391 = vmatprep.subr.bf16.mxu0 0
        %1392 = vmatpush1.bf16.xpose.msra.mxu0 0
        %1393 = vmatprep.subr.bf16.mxu0 0
        %1394 = vmatpush1.bf16.xpose.msra.mxu0 0
        %1395 = vmatprep.subr.bf16.mxu0 0
        %1396 = vmatpush1.bf16.xpose.msra.mxu0 0
        %1397 = vmatprep.subr.bf16.mxu0 0
        %1398 = vmatpush1.bf16.xpose.msra.mxu0 0
        %1399 = vmatprep.mubr.bf16.mxu0 0
        %1400 = vmatmul.mubr.bf16.gmra.mrb[0].mxu0 %v1359
        %v1401 = vpop.f32.mrb[0].mxu0
        %v1402 = vadd.f32 0.0, %v1401
        %v1403 = vpop.f32.mrb[0].mxu0
        %v1404 = vpop.f32.mrb[0].mxu0
        %v1405 = vpop.f32.mrb[0].mxu0
        %1406 = vdwg.mxu0
        %v1407 = vadd.f32 %v682, %v1402
        %v1408 = vld [vmem:[%s662] sm:$0xf]
        %v1409 = vld [vmem:[%s662 + $0x4] sm:$0xf]
        %v1410 = vld [vmem:[%s662 + $0x8] sm:$0xf]
        %v1411 = vld [vmem:[%s662 + $0xc] sm:$0xf]
        %v1412 = vpack.c.bf16 %v1407, %v1407
        %v1413 = vld [vmem:[%s558] sm:$0x1]
        %v1415 = vlaneseq
        %v1416 = vshrl.u32 %v1415, 7
        %v1417 = vsub.s32 0, %v1416
        %v1418 = vrot.slane %v1413, %v1417
        %v1424 = vunpack.c.l.b16 %v1408
        %v1425 = vunpack.c.l.b16 %v1409
        %v1426 = vunpack.c.l.b16 %v1410
        %v1427 = vunpack.c.l.b16 %v1411
        %v1428 = vpack.c.b16 %v1425, %v1424
        %v1429 = vpack.c.b16 %v1427, %v1426
        %v1431 = vsel %vm691, %v1412, 0
        %v1434 = vsel %vm691, %v1428, 0
        %v1437 = vsel %vm691, %v1429, 0
        %1439 = vmatprep.subr.bf16.mxu0 0
        %1440 = vmatpush1.bf16.xpose.msra.mxu0 %v1434
        %1441 = vmatprep.subr.bf16.mxu0 0
        %1442 = vmatpush1.bf16.xpose.msra.mxu0 %v1437
        %1443 = vmatprep.subr.bf16.mxu0 0
        %1444 = vmatpush1.bf16.xpose.msra.mxu0 0
        %1445 = vmatprep.subr.bf16.mxu0 0
        %1446 = vmatpush1.bf16.xpose.msra.mxu0 0
        %1447 = vmatprep.subr.bf16.mxu0 0
        %1448 = vmatpush1.bf16.xpose.msra.mxu0 0
        %1449 = vmatprep.subr.bf16.mxu0 0
        %1450 = vmatpush1.bf16.xpose.msra.mxu0 0
        %1451 = vmatprep.subr.bf16.mxu0 0
        %1452 = vmatpush1.bf16.xpose.msra.mxu0 0
        %1453 = vmatprep.subr.bf16.mxu0 0
        %1454 = vmatpush1.bf16.xpose.msra.mxu0 0
        %1455 = vmatprep.subr.bf16.mxu0 0
        %1456 = vmatpush1.bf16.xpose.msra.mxu0 0
        %1457 = vmatprep.subr.bf16.mxu0 0
        %1458 = vmatpush1.bf16.xpose.msra.mxu0 0
        %1459 = vmatprep.subr.bf16.mxu0 0
        %1460 = vmatpush1.bf16.xpose.msra.mxu0 0
        %1461 = vmatprep.subr.bf16.mxu0 0
        %1462 = vmatpush1.bf16.xpose.msra.mxu0 0
        %1463 = vmatprep.subr.bf16.mxu0 0
        %1464 = vmatpush1.bf16.xpose.msra.mxu0 0
        %1465 = vmatprep.subr.bf16.mxu0 0
        %1466 = vmatpush1.bf16.xpose.msra.mxu0 0
        %1467 = vmatprep.subr.bf16.mxu0 0
        %1468 = vmatpush1.bf16.xpose.msra.mxu0 0
        %1469 = vmatprep.subr.bf16.mxu0 0
        %1470 = vmatpush1.bf16.xpose.msra.mxu0 0
        %1471 = vmatprep.mubr.bf16.mxu0 0
        %1472 = vmatmul.mubr.bf16.gmra.mrb[0].mxu0 %v1431
        %v1473 = vpop.f32.mrb[0].mxu0
        %v1474 = vadd.f32 %v1418, %v1473
        %v1475 = vpop.f32.mrb[0].mxu0
        %v1476 = vpop.f32.mrb[0].mxu0
        %v1477 = vpop.f32.mrb[0].mxu0
        %1478 = vdwg.mxu0
        %v1479 = vmax.f32 %v1474, 0.0
        %v1480 = vld [vmem:[%s667] sm:$0xf]
        %v1481 = vld [vmem:[%s667 + $0x4] sm:$0xf]
        %v1482 = vld [vmem:[%s667 + $0x8] sm:$0xf]
        %v1483 = vld [vmem:[%s667 + $0xc] sm:$0xf]
        %v1484 = vpack.c.bf16 %v1479, %v1479
        %v1489 = vunpack.c.l.b16 %v1480
        %v1490 = vunpack.c.l.b16 %v1481
        %v1491 = vunpack.c.l.b16 %v1482
        %v1492 = vunpack.c.l.b16 %v1483
        %v1493 = vpack.c.b16 %v1490, %v1489
        %v1494 = vpack.c.b16 %v1492, %v1491
        %v1496 = vsel %vm691, %v1484, 0
        %v1499 = vsel %vm691, %v1493, 0
        %v1502 = vsel %vm691, %v1494, 0
        %1504 = vmatprep.subr.bf16.mxu0 0
        %1505 = vmatpush1.bf16.xpose.msra.mxu0 %v1499
        %1506 = vmatprep.subr.bf16.mxu0 0
        %1507 = vmatpush1.bf16.xpose.msra.mxu0 %v1502
        %1508 = vmatprep.subr.bf16.mxu0 0
        %1509 = vmatpush1.bf16.xpose.msra.mxu0 0
        %1510 = vmatprep.subr.bf16.mxu0 0
        %1511 = vmatpush1.bf16.xpose.msra.mxu0 0
        %1512 = vmatprep.subr.bf16.mxu0 0
        %1513 = vmatpush1.bf16.xpose.msra.mxu0 0
        %1514 = vmatprep.subr.bf16.mxu0 0
        %1515 = vmatpush1.bf16.xpose.msra.mxu0 0
        %1516 = vmatprep.subr.bf16.mxu0 0
        %1517 = vmatpush1.bf16.xpose.msra.mxu0 0
        %1518 = vmatprep.subr.bf16.mxu0 0
        %1519 = vmatpush1.bf16.xpose.msra.mxu0 0
        %1520 = vmatprep.subr.bf16.mxu0 0
        %1521 = vmatpush1.bf16.xpose.msra.mxu0 0
        %1522 = vmatprep.subr.bf16.mxu0 0
        %1523 = vmatpush1.bf16.xpose.msra.mxu0 0
        %1524 = vmatprep.subr.bf16.mxu0 0
        %1525 = vmatpush1.bf16.xpose.msra.mxu0 0
        %1526 = vmatprep.subr.bf16.mxu0 0
        %1527 = vmatpush1.bf16.xpose.msra.mxu0 0
        %1528 = vmatprep.subr.bf16.mxu0 0
        %1529 = vmatpush1.bf16.xpose.msra.mxu0 0
        %1530 = vmatprep.subr.bf16.mxu0 0
        %1531 = vmatpush1.bf16.xpose.msra.mxu0 0
        %1532 = vmatprep.subr.bf16.mxu0 0
        %1533 = vmatpush1.bf16.xpose.msra.mxu0 0
        %1534 = vmatprep.subr.bf16.mxu0 0
        %1535 = vmatpush1.bf16.xpose.msra.mxu0 0
        %1536 = vmatprep.mubr.bf16.mxu0 0
        %1537 = vmatmul.mubr.bf16.gmra.mrb[0].mxu0 %v1496
        %v1538 = vpop.f32.mrb[0].mxu0
        %v1539 = vadd.f32 0.0, %v1538
        %v1540 = vpop.f32.mrb[0].mxu0
        %v1541 = vpop.f32.mrb[0].mxu0
        %v1542 = vpop.f32.mrb[0].mxu0
        %1543 = vdwg.mxu0
        %v1544 = vadd.f32 %v1407, %v1539
        %v1545 = vld [vmem:[%s670] sm:$0x1]
        %v1547 = vlaneseq
        %v1548 = vshrl.u32 %v1547, 7
        %v1549 = vsub.s32 0, %v1548
        %v1550 = vrot.slane %v1545, %v1549
        %v1552 = vadd.f32 %v1544, %v1550
        %1553 = vst.msk [vmem:[#allocation2] sm:$0xff] %vm691, %v1552
        %p1554 = scmp.eq.s32.totalorder %s36, 1
        // Predicated region
        $region93: #{tpu_custom_call.1} parent=71 // pred_check
          %p1555 = pneg %p1554
        $region94: #{tpu_custom_call.1} parent=71 // pred_check_branch
          %1557 = sbr.rel (%p1555) target = $region96
        $region95: #{tpu_custom_call.1} parent=71 // pred_region
          %v1558 = vld [vmem:[%s11] sm:$0x1]
          %v1559 = vld [vmem:[%s12] sm:$0x1]
          %v1560 = vsel %vm691, %v1552, 0.0
          %1561 = vadd.xlane.f32.xlu0 %v1560
          %v1562 = vpop.xlane.xlu0 %1561
          %v1563 = vmul.f32 %v1562, %v695
          %v1564 = vsub.f32 %v1552, %v1563
          %v1565 = vmul.f32 %v1564, %v1564
          %v1566 = vsel %vm691, %v1565, 0.0
          %1567 = vadd.xlane.f32.xlu0 %v1566
          %v1568 = vpop.xlane.xlu0 %1567
          %v1569 = vmul.f32 %v1568, %v695
          %v1570 = vadd.f32 %v1569, 1e-05
          %v1571 = vrsqrt.pop %v1570
          %v1572 = vmul.f32 %v1564, %v1571
          %v1574 = vlaneseq
          %v1575 = vshrl.u32 %v1574, 7
          %v1576 = vsub.s32 0, %v1575
          %v1577 = vrot.slane %v1558, %v1576
          %v1579 = vmul.f32 %v1572, %v1577
          %v1581 = vlaneseq
          %v1582 = vshrl.u32 %v1581, 7
          %v1583 = vsub.s32 0, %v1582
          %v1584 = vrot.slane %v1559, %v1583
          %v1586 = vadd.f32 %v1579, %v1584
          %1587 = vst.msk [vmem:[%s639] sm:$0xff] %vm691, %v1586
        $region96: #{tpu_custom_call.1} parent=71 // pred_fallthru
          _
        %s1588 = sand.u32 %s374, 1
        %s1589 = scalar_lea.sflag [#allocation5], %s1588
        %s1590 = sand.u32 %s374, 1
        %s1591 = smul.addr %s1590, 8
        %s1592 = scalar_lea.vmem [#allocation10], %s1591
        // Predicated region
        $region97: #{tpu_custom_call.1} parent=71 // pred_check
          %p1593 = pneg %p384
        $region98: #{tpu_custom_call.1} parent=71 // pred_check_branch
          %1595 = sbr.rel (%p1593) target = $region100
        $region99: #{tpu_custom_call.1} parent=71 // pred_region
          %s1597 = ssub.s32 128, 128
          %1598 = vsyncadd %s1589, %s1597
          %s1599 = smul.addr %s35, 128
          %s1600 = scalar_lea.hbm %s13, %s1599
          %s1602 = sshll.u32 %s1592, 4
          %s1603 = int_to_ptr.vmem [resolvable:$true] %s1602
          %1605 = dma.vmem_to_hbm [thread:$0]  %s1603, 128, %s1600, %s1589
        $region100: #{tpu_custom_call.1} parent=71 // pred_fallthru
          _
      $region72: #{tpu_custom_call.1} parent=5 // pred_fallthru
        _
      %p1606 = scmp.le.s32.totalorder 2, %s26
      // Predicated region
      $region101: #{tpu_custom_call.1} parent=5 // pred_check
        %p1607 = pneg %p1606
      $region102: #{tpu_custom_call.1} parent=5 // pred_check_branch
        %1609 = sbr.rel (%p1607) target = $region104
      $region103: #{tpu_custom_call.1} parent=5 // pred_region
        %s1610 = ssub.s32 %s26, 2
        // Predicated region
        $region105: #{tpu_custom_call.1} parent=103 // pred_check
          %p1611 = pneg %p390
        $region106: #{tpu_custom_call.1} parent=103 // pred_check_branch
          %1613 = sbr.rel (%p1611) target = $region108
        $region107: #{tpu_custom_call.1} parent=103 // pred_region
          %s1614 = sand.u32 %s375, 1
          %s1615 = scalar_lea.sflag [#allocation5], %s1614
          %s1616 = sand.u32 %s375, 1
          %s1617 = smul.addr %s1616, 8
          %s1618 = scalar_lea.vmem [#allocation10], %s1617
          %1619 = dma.done %s1615, 128
        $region108: #{tpu_custom_call.1} parent=103 // pred_fallthru
          _
      $region104: #{tpu_custom_call.1} parent=5 // pred_fallthru
        _
    $region6: #{tpu_custom_call.1} parent=1 // loop_footer
      %s30 = sadd.s32 1, %s26
    $region7: #{tpu_custom_call.1} parent=1 // loop_footer_branch
      %25 = sbr.rel target = $region3
    $region8: #{tpu_custom_call.1} parent=1 // loop_exit
      _
    %1620 = vsyncpa [#allocation4], 1
    %s1621 = scalar_lea.sflag [#allocation4], 1
    %1622 = vsyncpa %s1621, 1
    %1623 = vsyncpa [#allocation7], 1
    %1624 = vsyncpa [#allocation5], 1
    %s1625 = scalar_lea.sflag [#allocation5], 1
    %1626 = vsyncpa %s1625, 1

</llo_original>
